<compile_context>
chip_gen: v5e
topology: v5e:2x2
jax: 0.10.0
libtpu: 0.0.40
codegen_flags: <defaults>
</compile_context>

<pallas_src>
import functools

import jax
import jax.numpy as jnp
import numpy as np
from jax import lax
from jax.experimental import pallas as pl
from jax.experimental.pallas import tpu as pltpu


# --------------------------------- kernel ----------------------------------
def sandglass_kernel(x_ref, w1_ref, b1_ref, *rest,
                     H, W, Cin, Cout, ksize, use_residual, num_pw,
                     dw_mode, mm_dtype):
    out_ref = rest[-1]
    pw_refs = rest[:2 * num_pw]
    w2_ref, b2_ref = rest[2 * num_pw:2 * num_pw + 2]

    p = ksize // 2
    x = x_ref[...].astype(jnp.float32)                 # (Bt, H, W*Cin), lane dense
    Bt = x.shape[0]

    def h_border_mask(di, L):
        # 1.0 where the H-rolled row is in bounds, 0.0 on the wrapped border rows
        hh = lax.broadcasted_iota(jnp.int32, (1, H, L), 1)
        return ((hh + di >= 0) & (hh + di < H)).astype(jnp.float32)

    def dw_conv(inp, w_ref_, C):
        """Depthwise kxk 'same' conv (+ folded BN scale) in the folded
        (Bt, H, W*C) layout."""
        L = W * C
        if dw_mode == "mxu":
            # One banded (W*C, W*C) matmul per vertical tap ki.  The W shifts,
            # W borders, per-channel weight and BN scale are baked into the
            # banded matrix; the H shift is a sublane roll + border mask.
            acc = jnp.zeros((Bt * H, L), jnp.float32)
            for ki in range(ksize):
                di = ki - p
                v = inp
                if di != 0:
                    v = pltpu.roll(v, shift=(-di) % H, axis=1) * h_border_mask(di, L)
                acc = acc + jnp.dot(
                    v.reshape(Bt * H, L).astype(mm_dtype), w_ref_[ki],
                    preferred_element_type=jnp.float32)
            return acc.reshape(Bt, H, L)
        # VPU fallback: masked lane/sublane rolls + per-(h, lane) weight planes
        # (BN scale and both 'same' borders already folded into the planes).
        acc = jnp.zeros((Bt, H, L), jnp.float32)
        for kj in range(ksize):
            dj = kj - p
            vj = inp if dj == 0 else pltpu.roll(inp, shift=(-dj * C) % L, axis=2)
            for ki in range(ksize):
                di = ki - p
                v = vj if di == 0 else pltpu.roll(vj, shift=(-di) % H, axis=1)
                acc = acc + v * w_ref_[ki, kj][None]
        return acc

    # ---- dw1 (+ folded BN) + ReLU6 ----
    h1 = jnp.clip(dw_conv(x, w1_ref, Cin) + b1_ref[...], 0.0, 6.0)

    # ---- pointwise 1x1 stage(s): block-diagonal matmul(s) (BN folded) ----
    cur = h1.reshape(Bt * H, W * Cin)
    for i in range(num_pw):
        cur = jnp.dot(cur.astype(mm_dtype), pw_refs[2 * i][...],
                      preferred_element_type=jnp.float32) + pw_refs[2 * i + 1][...]
    e = jnp.clip(cur, 0.0, 6.0).reshape(Bt, H, W * Cout)

    # ---- dw2 (+ folded BN) + ReLU6 ----
    o = jnp.clip(dw_conv(e, w2_ref, Cout) + b2_ref[...], 0.0, 6.0)

    if use_residual:
        o = o + x                                       # aligned, unpadded input
    out_ref[...] = o.astype(out_ref.dtype)


# ----------------------------- weight folding -------------------------------
def _dw_weight_planes(w_dw, s, H, W, p):
    """(k, k, H, W*C) f32 per-tap weight planes for the VPU path: depthwise
    weight * BN scale, with the H/W 'same' borders zeroed (masks the rolls)."""
    k = w_dw.shape[0]
    C = w_dw.shape[-1]
    h = jnp.arange(H)
    w = jnp.arange(W)
    rows = []
    for ki in range(k):
        cols = []
        for kj in range(k):
            di, dj = ki - p, kj - p
            hv = ((h + di >= 0) & (h + di < H)).astype(jnp.float32)
            wv = ((w + dj >= 0) & (w + dj < W)).astype(jnp.float32)
            tap = w_dw[ki, kj].astype(jnp.float32) * s.astype(jnp.float32)
            cols.append(hv[:, None, None] * wv[None, :, None] * tap[None, None, :])
        rows.append(jnp.stack(cols))
    return jnp.stack(rows).reshape(k, k, H, W * C)


def _dw_band_matrices(w_dw, s, W, p):
    """(k, W*C, W*C) banded block-diagonal matrices for the MXU path: band[ki]
    applied to row x[h+ki-p] of the folded layout performs all W-direction taps
    ('same' borders included) with depthwise weight * BN scale."""
    k = w_dw.shape[0]
    C = w_dw.shape[-1]
    L = W * C
    wi = jnp.arange(W)
    eye_c = jnp.eye(C, dtype=jnp.float32)
    bands = []
    for ki in range(k):
        acc = jnp.zeros((W, W, C), jnp.float32)           # [w_in, w_out, c]
        for kj in range(k):
            dj = kj - p
            sel = (wi[None, :] + dj == wi[:, None]).astype(jnp.float32)
            tap = w_dw[ki, kj].astype(jnp.float32) * s.astype(jnp.float32)
            acc = acc + sel[:, :, None] * tap[None, None, :]
        bands.append(jnp.einsum("ioc,cd->icod", acc, eye_c).reshape(L, L))
    return jnp.stack(bands)


def _block_diag(wm, W):
    """(ci, co) -> (W*ci, W*co) block-diagonal matrix = folded 1x1 conv."""
    ci, co = wm.shape
    eye = jnp.eye(W, dtype=wm.dtype)
    return jnp.einsum("wv,io->wivo", eye, wm).reshape(W * ci, W * co)


# --------------------------------- wrapper ----------------------------------
def sandglass_forward(x_nhwc, params, *, ksize=3, mm_dtype=jnp.bfloat16,
                      dw_mode="auto", fuse_pointwise=None, max_batch_tile=None):
    """x_nhwc: (B, H, W, Cin) float32. Returns (B, H, W, Cout).
    BN is applied in folded (inference) form; mm_dtype is the MXU operand dtype
    (accumulation is always f32)."""
    if ksize % 2 != 1:
        raise NotImplementedError("even ksize: asymmetric 'same' padding unsupported")
    # TODO(synk): stride > 1 not implemented (module default stride=1).

    B, H, W, Cin = x_nhwc.shape
    mid = params["w_pwr"].shape[1]
    Cout = params["w_pwe"].shape[1]
    use_residual = (Cin == Cout)
    p = ksize // 2
    f32 = jnp.float32
    mm_bytes = jnp.dtype(mm_dtype).itemsize

    # ---- VMEM budget: scoped-style, conservative for v7x's 64 MiB ----
    try:
        phys_vmem = int(pltpu.get_tpu_info().vmem_capacity_bytes)
    except Exception:
        phys_vmem = 64 << 20
    budget = min(phys_vmem // 2, 32 << 20)

    # ---- pick the depthwise implementation (MXU-banded vs VPU-roll) ----
    band_bytes = ksize * ((W * Cin) ** 2 + (W * Cout) ** 2) * mm_bytes
    if dw_mode == "auto":
        dw_mode = "mxu" if band_bytes <= budget // 4 else "roll"
    # TODO(synk): add an unfolded channel-matmul path for very large W*C where
    # the (W*C)^2 banded / block-diagonal weights no longer fit VMEM.

    # ---- pointwise weights (BN scale folded into the columns) ----
    if fuse_pointwise is None:
        fuse_pointwise = Cin * Cout <= Cin * mid + mid * Cout
    num_pw = 1 if fuse_pointwise else 2
    wr = params["w_pwr"].astype(f32) * params["s_pwr"].astype(f32)[None, :]
    br = params["b_pwr"].astype(f32)
    we = params["w_pwe"].astype(f32) * params["s_pwe"].astype(f32)[None, :]
    be = params["b_pwe"].astype(f32)
    if fuse_pointwise:
        pw = [(_block_diag(wr @ we, W).astype(mm_dtype),
               jnp.tile(br @ we + be, W).reshape(1, W * Cout))]
    else:
        pw = [(_block_diag(wr, W).astype(mm_dtype), jnp.tile(br, W).reshape(1, W * mid)),
              (_block_diag(we, W).astype(mm_dtype), jnp.tile(be, W).reshape(1, W * Cout))]

    # ---- depthwise weights: BN scale and 'same' borders folded in wrapper ----
    if dw_mode == "mxu":
        w1 = _dw_band_matrices(params["w_dw1"], params["s_dw1"], W, p).astype(mm_dtype)
        w2 = _dw_band_matrices(params["w_dw2"], params["s_dw2"], W, p).astype(mm_dtype)
    else:
        w1 = _dw_weight_planes(params["w_dw1"], params["s_dw1"], H, W, p)
        w2 = _dw_weight_planes(params["w_dw2"], params["s_dw2"], H, W, p)
    b1 = jnp.tile(params["b_dw1"].astype(f32), W).reshape(1, W * Cin)
    b2 = jnp.tile(params["b_dw2"].astype(f32), W).reshape(1, W * Cout)

    weight_args = [w1, b1]
    for wbd, bb in pw:
        weight_args += [wbd, bb]
    weight_args += [w2, b2]
    invariant_bytes = sum(int(a.size) * a.dtype.itemsize for a in weight_args)

    # ---- batch tile: BlockSpec buffers + live f32 intermediates in budget ----
    tile_bytes = H * W * max(Cin, Cout) * 4
    live_tiles = 12          # x/out double-buffered (4) + ~8 live f32 intermediates
    avail = max(budget - 2 * invariant_bytes, tile_bytes)
    bt = max(1, avail // (live_tiles * tile_bytes))
    bt = min(bt, B, 128 if max_batch_tile is None else int(max_batch_tile))
    if B >= 2:
        bt = min(bt, pl.cdiv(B, 2))    # >= 2 grid steps so both v7x TCs get work
    bt = max(1, int(bt))
    grid = (pl.cdiv(B, bt),)           # partial last tile is masked by Pallas

    vmem_limit = int(min(phys_vmem,
                         max(2 * invariant_bytes + live_tiles * tile_bytes * bt
                             + (2 << 20), 32 << 20)))

    x_f = x_nhwc.reshape(B, H, W * Cin)      # lane-dense folded layout (free)

    kernel = functools.partial(
        sandglass_kernel, H=H, W=W, Cin=Cin, Cout=Cout, ksize=ksize,
        use_residual=use_residual, num_pw=num_pw, dw_mode=dw_mode,
        mm_dtype=mm_dtype)

    out_shape = jax.ShapeDtypeStruct((B, H, W * Cout), x_nhwc.dtype)
    x_spec = pl.BlockSpec((bt, H, W * Cin), lambda b: (b, 0, 0))
    out_spec = pl.BlockSpec((bt, H, W * Cout), lambda b: (b, 0, 0))
    cparams = pltpu.CompilerParams(dimension_semantics=("parallel",),
                                   vmem_limit_bytes=vmem_limit)

    def call(single_buffer_weights):
        def inv_spec(shape):
            idx = lambda b, n=len(shape): (0,) * n
            if single_buffer_weights:
                # grid-invariant inputs: double buffering only wastes VMEM
                return pl.BlockSpec(shape, idx, pipeline_mode=pl.Buffered(1))
            return pl.BlockSpec(shape, idx)
        in_specs = [x_spec] + [inv_spec(a.shape) for a in weight_args]
        return pl.pallas_call(
            kernel,
            out_shape=out_shape,
            grid_spec=pltpu.PrefetchScalarGridSpec(
                num_scalar_prefetch=0, grid=grid,
                in_specs=in_specs, out_specs=out_spec),
            compiler_params=cparams,
        )(x_f, *weight_args)

    try:
        out_f = call(True)
    except Exception:
        # pipeline_mode=pl.Buffered(1) not supported on this jax build
        out_f = call(False)
    return out_f.reshape(B, H, W, Cout)


# ---------------- pure-JAX reference (correctness check) ----------------
def ref_forward(x, params, *, ksize=3):
    hp = lax.Precision.HIGHEST

    def dwconv(v, w):
        C = v.shape[-1]
        return lax.conv_general_dilated(
            v, w.reshape(ksize, ksize, 1, C), (1, 1), "SAME",
            feature_group_count=C,
            dimension_numbers=("NHWC", "HWIO", "NHWC"), precision=hp)

    h = dwconv(x, params["w_dw1"])
    h = jnp.clip(h * params["s_dw1"] + params["b_dw1"], 0.0, 6.0)
    m = jnp.einsum("bhwc,cd->bhwd", h, params["w_pwr"], precision=hp)
    m = m * params["s_pwr"] + params["b_pwr"]
    e = jnp.einsum("bhwc,cd->bhwd", m, params["w_pwe"], precision=hp)
    e = jnp.clip(e * params["s_pwe"] + params["b_pwe"], 0.0, 6.0)
    o = dwconv(e, params["w_dw2"])
    o = jnp.clip(o * params["s_dw2"] + params["b_dw2"], 0.0, 6.0)
    if x.shape[-1] == o.shape[-1]:
        o = o + x
    return o


if __name__ == "__main__":
    key = jax.random.PRNGKey(0)
    keys = jax.random.split(key, 10)

    B, H, W = 2, 16, 16
    inp, mid, oup = 8, 4, 8        # inp == oup -> residual; W*C = 128 (lane dense)
    ksize = 3

    x = jax.random.normal(keys[0], (B, H, W, inp), jnp.float32)

    def bn_params(k, C):
        k1, k2, k3, k4 = jax.random.split(k, 4)
        gamma = 1.0 + 0.1 * jax.random.normal(k1, (C,))
        beta = 0.1 * jax.random.normal(k2, (C,))
        mean = 0.1 * jax.random.normal(k3, (C,))
        var = jnp.abs(jax.random.normal(k4, (C,))) + 0.5
        scale = gamma / jnp.sqrt(var + 1e-5)
        bias = beta - mean * scale
        return scale.astype(jnp.float32), bias.astype(jnp.float32)

    params = {}
    params["w_dw1"] = 0.2 * jax.random.normal(keys[1], (ksize, ksize, inp), jnp.float32)
    params["s_dw1"], params["b_dw1"] = bn_params(keys[2], inp)
    params["w_pwr"] = 0.2 * jax.random.normal(keys[3], (inp, mid), jnp.float32)
    params["s_pwr"], params["b_pwr"] = bn_params(keys[4], mid)
    params["w_pwe"] = 0.2 * jax.random.normal(keys[5], (mid, oup), jnp.float32)
    params["s_pwe"], params["b_pwe"] = bn_params(keys[6], oup)
    params["w_dw2"] = 0.2 * jax.random.normal(keys[7], (ksize, ksize, oup), jnp.float32)
    params["s_dw2"], params["b_dw2"] = bn_params(keys[8], oup)

    ref = ref_forward(x, params, ksize=ksize)

    # A) default: MXU-banded depthwise, bf16 MXU operands, fused pointwise.
    #    Tolerance sized for bf16 operand rounding across three matmul stages.
    out = jax.block_until_ready(sandglass_forward(x, params, ksize=ksize))
    assert out.shape == (B, H, W, oup)
    np.testing.assert_allclose(np.asarray(out), np.asarray(ref), rtol=5e-2, atol=5e-2)

    # B) VPU roll-based depthwise, f32 MXU operands (near-exact path).
    out_f32 = jax.block_until_ready(
        sandglass_forward(x, params, ksize=ksize, mm_dtype=jnp.float32,
                          dw_mode="roll"))
    np.testing.assert_allclose(np.asarray(out_f32), np.asarray(ref),
                               rtol=1e-2, atol=1e-2)

    # C) unfused pointwise (two block-diagonal matmuls), default bf16 / MXU dw.
    out_uf = jax.block_until_ready(
        sandglass_forward(x, params, ksize=ksize, fuse_pointwise=False))
    np.testing.assert_allclose(np.asarray(out_uf), np.asarray(ref),
                               rtol=5e-2, atol=5e-2)

    print("KERNEL_OK")
</pallas_src>

<mosaic_0001>
module attributes {stable_mosaic.version = 11 : i64} {
  func.func @sandglass_kernel(%arg0: i32, %arg1: memref<1x16x128xf32, #tpu.memory_space<vmem>>, %arg2: memref<3x128x128xbf16, #tpu.memory_space<vmem>>, %arg3: memref<1x128xf32, #tpu.memory_space<vmem>>, %arg4: memref<128x128xbf16, #tpu.memory_space<vmem>>, %arg5: memref<1x128xf32, #tpu.memory_space<vmem>>, %arg6: memref<3x128x128xbf16, #tpu.memory_space<vmem>>, %arg7: memref<1x128xf32, #tpu.memory_space<vmem>>, %arg8: memref<1x16x128xf32, #tpu.memory_space<vmem>>) attributes {dimension_semantics = [#tpu.dimension_semantics<parallel>], iteration_bounds = array<i64: 2>, scalar_prefetch = 0 : i64, scratch_operands = 0 : i64, tpu.core_type = #tpu.core_type<tc>, window_params = [{transform_indices = @transform_0, window_bounds = array<i64: 1, 16, 128>}, {pipeline_mode = #tpu.pipeline_mode<synchronous>, transform_indices = @transform_1, window_bounds = array<i64: 3, 128, 128>}, {pipeline_mode = #tpu.pipeline_mode<synchronous>, transform_indices = @transform_2, window_bounds = array<i64: 1, 128>}, {pipeline_mode = #tpu.pipeline_mode<synchronous>, transform_indices = @transform_3, window_bounds = array<i64: 128, 128>}, {pipeline_mode = #tpu.pipeline_mode<synchronous>, transform_indices = @transform_4, window_bounds = array<i64: 1, 128>}, {pipeline_mode = #tpu.pipeline_mode<synchronous>, transform_indices = @transform_5, window_bounds = array<i64: 3, 128, 128>}, {pipeline_mode = #tpu.pipeline_mode<synchronous>, transform_indices = @transform_6, window_bounds = array<i64: 1, 128>}, {transform_indices = @transform_7, window_bounds = array<i64: 1, 16, 128>}]} {
    %c0 = arith.constant 0 : index
    %c0_0 = arith.constant 0 : index
    %c0_1 = arith.constant 0 : index
    %0 = vector.load %arg1[%c0, %c0_0, %c0_1] : memref<1x16x128xf32, #tpu.memory_space<vmem>>, vector<1x16x128xf32>
    %cst = arith.constant 0.000000e+00 : f32
    %1 = vector.broadcast %cst : f32 to vector<16x128xf32>
    %c1_i32 = arith.constant 1 : i32
    %2 = tpu.dynamic_rotate %0 by %c1_i32 dim 1 : vector<1x16x128xf32>, i32 -> vector<1x16x128xf32>
    %3 = tpu.iota {dimensions = array<i32: 1>} : vector<1x16x128xi32>
    %c-1_i32 = arith.constant -1 : i32
    %4 = vector.broadcast %c-1_i32 : i32 to vector<1x16x128xi32>
    %5 = arith.addi %3, %4 : vector<1x16x128xi32>
    %c0_i32 = arith.constant 0 : i32
    %6 = vector.broadcast %c0_i32 : i32 to vector<1x16x128xi32>
    %7 = arith.cmpi sge, %5, %6 : vector<1x16x128xi32>
    %c-1_i32_2 = arith.constant -1 : i32
    %8 = vector.broadcast %c-1_i32_2 : i32 to vector<1x16x128xi32>
    %9 = arith.addi %3, %8 : vector<1x16x128xi32>
    %c16_i32 = arith.constant 16 : i32
    %10 = vector.broadcast %c16_i32 : i32 to vector<1x16x128xi32>
    %11 = arith.cmpi slt, %9, %10 : vector<1x16x128xi32>
    %12 = arith.andi %7, %11 : vector<1x16x128xi1>
    %13 = arith.extui %12 : vector<1x16x128xi1> to vector<1x16x128xi32>
    %14 = arith.sitofp %13 : vector<1x16x128xi32> to vector<1x16x128xf32>
    %15 = arith.mulf %2, %14 : vector<1x16x128xf32>
    %16 = vector.shape_cast %15 : vector<1x16x128xf32> to vector<16x128xf32>
    %17 = arith.truncf %16 : vector<16x128xf32> to vector<16x128xbf16>
    %c0_3 = arith.constant 0 : index
    %c0_4 = arith.constant 0 : index
    %c0_5 = arith.constant 0 : index
    %18 = vector.load %arg2[%c0_3, %c0_4, %c0_5] : memref<3x128x128xbf16, #tpu.memory_space<vmem>>, vector<1x128x128xbf16>
    %19 = vector.shape_cast %18 : vector<1x128x128xbf16> to vector<128x128xbf16>
    %cst_6 = arith.constant dense<0.000000e+00> : vector<16x128xf32>
    %20 = tpu.matmul %17, %19, %cst_6 {dimension_numbers = #tpu.dot_dimension_numbers<[1], [0], [0], [1], [0, 0, 1, 1], [], []>} : vector<16x128xbf16>, vector<128x128xbf16>, vector<16x128xf32> -> vector<16x128xf32>
    %21 = arith.addf %1, %20 : vector<16x128xf32>
    %22 = vector.shape_cast %0 : vector<1x16x128xf32> to vector<16x128xf32>
    %23 = arith.truncf %22 : vector<16x128xf32> to vector<16x128xbf16>
    %c1 = arith.constant 1 : index
    %c0_7 = arith.constant 0 : index
    %c0_8 = arith.constant 0 : index
    %24 = vector.load %arg2[%c1, %c0_7, %c0_8] : memref<3x128x128xbf16, #tpu.memory_space<vmem>>, vector<1x128x128xbf16>
    %25 = vector.shape_cast %24 : vector<1x128x128xbf16> to vector<128x128xbf16>
    %cst_9 = arith.constant dense<0.000000e+00> : vector<16x128xf32>
    %26 = tpu.matmul %23, %25, %cst_9 {dimension_numbers = #tpu.dot_dimension_numbers<[1], [0], [0], [1], [0, 0, 1, 1], [], []>} : vector<16x128xbf16>, vector<128x128xbf16>, vector<16x128xf32> -> vector<16x128xf32>
    %27 = arith.addf %21, %26 : vector<16x128xf32>
    %c15_i32 = arith.constant 15 : i32
    %28 = tpu.dynamic_rotate %0 by %c15_i32 dim 1 : vector<1x16x128xf32>, i32 -> vector<1x16x128xf32>
    %29 = tpu.iota {dimensions = array<i32: 1>} : vector<1x16x128xi32>
    %c1_i32_10 = arith.constant 1 : i32
    %30 = vector.broadcast %c1_i32_10 : i32 to vector<1x16x128xi32>
    %31 = arith.addi %29, %30 : vector<1x16x128xi32>
    %c0_i32_11 = arith.constant 0 : i32
    %32 = vector.broadcast %c0_i32_11 : i32 to vector<1x16x128xi32>
    %33 = arith.cmpi sge, %31, %32 : vector<1x16x128xi32>
    %c1_i32_12 = arith.constant 1 : i32
    %34 = vector.broadcast %c1_i32_12 : i32 to vector<1x16x128xi32>
    %35 = arith.addi %29, %34 : vector<1x16x128xi32>
    %c16_i32_13 = arith.constant 16 : i32
    %36 = vector.broadcast %c16_i32_13 : i32 to vector<1x16x128xi32>
    %37 = arith.cmpi slt, %35, %36 : vector<1x16x128xi32>
    %38 = arith.andi %33, %37 : vector<1x16x128xi1>
    %39 = arith.extui %38 : vector<1x16x128xi1> to vector<1x16x128xi32>
    %40 = arith.sitofp %39 : vector<1x16x128xi32> to vector<1x16x128xf32>
    %41 = arith.mulf %28, %40 : vector<1x16x128xf32>
    %42 = vector.shape_cast %41 : vector<1x16x128xf32> to vector<16x128xf32>
    %43 = arith.truncf %42 : vector<16x128xf32> to vector<16x128xbf16>
    %c2 = arith.constant 2 : index
    %c0_14 = arith.constant 0 : index
    %c0_15 = arith.constant 0 : index
    %44 = vector.load %arg2[%c2, %c0_14, %c0_15] : memref<3x128x128xbf16, #tpu.memory_space<vmem>>, vector<1x128x128xbf16>
    %45 = vector.shape_cast %44 : vector<1x128x128xbf16> to vector<128x128xbf16>
    %cst_16 = arith.constant dense<0.000000e+00> : vector<16x128xf32>
    %46 = tpu.matmul %43, %45, %cst_16 {dimension_numbers = #tpu.dot_dimension_numbers<[1], [0], [0], [1], [0, 0, 1, 1], [], []>} : vector<16x128xbf16>, vector<128x128xbf16>, vector<16x128xf32> -> vector<16x128xf32>
    %47 = arith.addf %27, %46 : vector<16x128xf32>
    %48 = vector.shape_cast %47 : vector<16x128xf32> to vector<1x16x128xf32>
    %c0_17 = arith.constant 0 : index
    %c0_18 = arith.constant 0 : index
    %49 = vector.load %arg3[%c0_17, %c0_18] : memref<1x128xf32, #tpu.memory_space<vmem>>, vector<1x128xf32>
    %50 = vector.shape_cast %49 : vector<1x128xf32> to vector<1x1x128xf32>
    %51 = vector.broadcast %50 : vector<1x1x128xf32> to vector<1x16x128xf32>
    %52 = arith.addf %48, %51 : vector<1x16x128xf32>
    %cst_19 = arith.constant 0.000000e+00 : f32
    %cst_20 = arith.constant 6.000000e+00 : f32
    %53 = vector.broadcast %cst_19 : f32 to vector<1x16x128xf32>
    %54 = arith.maximumf %53, %52 : vector<1x16x128xf32>
    %55 = vector.broadcast %cst_20 : f32 to vector<1x16x128xf32>
    %56 = arith.minimumf %55, %54 : vector<1x16x128xf32>
    %57 = vector.shape_cast %56 : vector<1x16x128xf32> to vector<16x128xf32>
    %58 = arith.truncf %57 : vector<16x128xf32> to vector<16x128xbf16>
    %c0_21 = arith.constant 0 : index
    %c0_22 = arith.constant 0 : index
    %59 = vector.load %arg4[%c0_21, %c0_22] : memref<128x128xbf16, #tpu.memory_space<vmem>>, vector<128x128xbf16>
    %cst_23 = arith.constant dense<0.000000e+00> : vector<16x128xf32>
    %60 = tpu.matmul %58, %59, %cst_23 {dimension_numbers = #tpu.dot_dimension_numbers<[1], [0], [0], [1], [0, 0, 1, 1], [], []>} : vector<16x128xbf16>, vector<128x128xbf16>, vector<16x128xf32> -> vector<16x128xf32>
    %c0_24 = arith.constant 0 : index
    %c0_25 = arith.constant 0 : index
    %61 = vector.load %arg5[%c0_24, %c0_25] : memref<1x128xf32, #tpu.memory_space<vmem>>, vector<1x128xf32>
    %62 = vector.broadcast %61 : vector<1x128xf32> to vector<16x128xf32>
    %63 = arith.addf %60, %62 : vector<16x128xf32>
    %cst_26 = arith.constant 0.000000e+00 : f32
    %cst_27 = arith.constant 6.000000e+00 : f32
    %64 = vector.broadcast %cst_26 : f32 to vector<16x128xf32>
    %65 = arith.maximumf %64, %63 : vector<16x128xf32>
    %66 = vector.broadcast %cst_27 : f32 to vector<16x128xf32>
    %67 = arith.minimumf %66, %65 : vector<16x128xf32>
    %68 = vector.shape_cast %67 : vector<16x128xf32> to vector<1x16x128xf32>
    %cst_28 = arith.constant 0.000000e+00 : f32
    %69 = vector.broadcast %cst_28 : f32 to vector<16x128xf32>
    %c1_i32_29 = arith.constant 1 : i32
    %70 = tpu.dynamic_rotate %68 by %c1_i32_29 dim 1 : vector<1x16x128xf32>, i32 -> vector<1x16x128xf32>
    %71 = tpu.iota {dimensions = array<i32: 1>} : vector<1x16x128xi32>
    %c-1_i32_30 = arith.constant -1 : i32
    %72 = vector.broadcast %c-1_i32_30 : i32 to vector<1x16x128xi32>
    %73 = arith.addi %71, %72 : vector<1x16x128xi32>
    %c0_i32_31 = arith.constant 0 : i32
    %74 = vector.broadcast %c0_i32_31 : i32 to vector<1x16x128xi32>
    %75 = arith.cmpi sge, %73, %74 : vector<1x16x128xi32>
    %c-1_i32_32 = arith.constant -1 : i32
    %76 = vector.broadcast %c-1_i32_32 : i32 to vector<1x16x128xi32>
    %77 = arith.addi %71, %76 : vector<1x16x128xi32>
    %c16_i32_33 = arith.constant 16 : i32
    %78 = vector.broadcast %c16_i32_33 : i32 to vector<1x16x128xi32>
    %79 = arith.cmpi slt, %77, %78 : vector<1x16x128xi32>
    %80 = arith.andi %75, %79 : vector<1x16x128xi1>
    %81 = arith.extui %80 : vector<1x16x128xi1> to vector<1x16x128xi32>
    %82 = arith.sitofp %81 : vector<1x16x128xi32> to vector<1x16x128xf32>
    %83 = arith.mulf %70, %82 : vector<1x16x128xf32>
    %84 = vector.shape_cast %83 : vector<1x16x128xf32> to vector<16x128xf32>
    %85 = arith.truncf %84 : vector<16x128xf32> to vector<16x128xbf16>
    %c0_34 = arith.constant 0 : index
    %c0_35 = arith.constant 0 : index
    %c0_36 = arith.constant 0 : index
    %86 = vector.load %arg6[%c0_34, %c0_35, %c0_36] : memref<3x128x128xbf16, #tpu.memory_space<vmem>>, vector<1x128x128xbf16>
    %87 = vector.shape_cast %86 : vector<1x128x128xbf16> to vector<128x128xbf16>
    %cst_37 = arith.constant dense<0.000000e+00> : vector<16x128xf32>
    %88 = tpu.matmul %85, %87, %cst_37 {dimension_numbers = #tpu.dot_dimension_numbers<[1], [0], [0], [1], [0, 0, 1, 1], [], []>} : vector<16x128xbf16>, vector<128x128xbf16>, vector<16x128xf32> -> vector<16x128xf32>
    %89 = arith.addf %69, %88 : vector<16x128xf32>
    %90 = vector.shape_cast %68 : vector<1x16x128xf32> to vector<16x128xf32>
    %91 = arith.truncf %90 : vector<16x128xf32> to vector<16x128xbf16>
    %c1_38 = arith.constant 1 : index
    %c0_39 = arith.constant 0 : index
    %c0_40 = arith.constant 0 : index
    %92 = vector.load %arg6[%c1_38, %c0_39, %c0_40] : memref<3x128x128xbf16, #tpu.memory_space<vmem>>, vector<1x128x128xbf16>
    %93 = vector.shape_cast %92 : vector<1x128x128xbf16> to vector<128x128xbf16>
    %cst_41 = arith.constant dense<0.000000e+00> : vector<16x128xf32>
    %94 = tpu.matmul %91, %93, %cst_41 {dimension_numbers = #tpu.dot_dimension_numbers<[1], [0], [0], [1], [0, 0, 1, 1], [], []>} : vector<16x128xbf16>, vector<128x128xbf16>, vector<16x128xf32> -> vector<16x128xf32>
    %95 = arith.addf %89, %94 : vector<16x128xf32>
    %c15_i32_42 = arith.constant 15 : i32
    %96 = tpu.dynamic_rotate %68 by %c15_i32_42 dim 1 : vector<1x16x128xf32>, i32 -> vector<1x16x128xf32>
    %97 = tpu.iota {dimensions = array<i32: 1>} : vector<1x16x128xi32>
    %c1_i32_43 = arith.constant 1 : i32
    %98 = vector.broadcast %c1_i32_43 : i32 to vector<1x16x128xi32>
    %99 = arith.addi %97, %98 : vector<1x16x128xi32>
    %c0_i32_44 = arith.constant 0 : i32
    %100 = vector.broadcast %c0_i32_44 : i32 to vector<1x16x128xi32>
    %101 = arith.cmpi sge, %99, %100 : vector<1x16x128xi32>
    %c1_i32_45 = arith.constant 1 : i32
    %102 = vector.broadcast %c1_i32_45 : i32 to vector<1x16x128xi32>
    %103 = arith.addi %97, %102 : vector<1x16x128xi32>
    %c16_i32_46 = arith.constant 16 : i32
    %104 = vector.broadcast %c16_i32_46 : i32 to vector<1x16x128xi32>
    %105 = arith.cmpi slt, %103, %104 : vector<1x16x128xi32>
    %106 = arith.andi %101, %105 : vector<1x16x128xi1>
    %107 = arith.extui %106 : vector<1x16x128xi1> to vector<1x16x128xi32>
    %108 = arith.sitofp %107 : vector<1x16x128xi32> to vector<1x16x128xf32>
    %109 = arith.mulf %96, %108 : vector<1x16x128xf32>
    %110 = vector.shape_cast %109 : vector<1x16x128xf32> to vector<16x128xf32>
    %111 = arith.truncf %110 : vector<16x128xf32> to vector<16x128xbf16>
    %c2_47 = arith.constant 2 : index
    %c0_48 = arith.constant 0 : index
    %c0_49 = arith.constant 0 : index
    %112 = vector.load %arg6[%c2_47, %c0_48, %c0_49] : memref<3x128x128xbf16, #tpu.memory_space<vmem>>, vector<1x128x128xbf16>
    %113 = vector.shape_cast %112 : vector<1x128x128xbf16> to vector<128x128xbf16>
    %cst_50 = arith.constant dense<0.000000e+00> : vector<16x128xf32>
    %114 = tpu.matmul %111, %113, %cst_50 {dimension_numbers = #tpu.dot_dimension_numbers<[1], [0], [0], [1], [0, 0, 1, 1], [], []>} : vector<16x128xbf16>, vector<128x128xbf16>, vector<16x128xf32> -> vector<16x128xf32>
    %115 = arith.addf %95, %114 : vector<16x128xf32>
    %116 = vector.shape_cast %115 : vector<16x128xf32> to vector<1x16x128xf32>
    %c0_51 = arith.constant 0 : index
    %c0_52 = arith.constant 0 : index
    %117 = vector.load %arg7[%c0_51, %c0_52] : memref<1x128xf32, #tpu.memory_space<vmem>>, vector<1x128xf32>
    %118 = vector.shape_cast %117 : vector<1x128xf32> to vector<1x1x128xf32>
    %119 = vector.broadcast %118 : vector<1x1x128xf32> to vector<1x16x128xf32>
    %120 = arith.addf %116, %119 : vector<1x16x128xf32>
    %cst_53 = arith.constant 0.000000e+00 : f32
    %cst_54 = arith.constant 6.000000e+00 : f32
    %121 = vector.broadcast %cst_53 : f32 to vector<1x16x128xf32>
    %122 = arith.maximumf %121, %120 : vector<1x16x128xf32>
    %123 = vector.broadcast %cst_54 : f32 to vector<1x16x128xf32>
    %124 = arith.minimumf %123, %122 : vector<1x16x128xf32>
    %125 = arith.addf %124, %0 : vector<1x16x128xf32>
    %c0_55 = arith.constant 0 : index
    %c0_56 = arith.constant 0 : index
    %c0_57 = arith.constant 0 : index
    %126 = vector.load %arg8[%c0_55, %c0_56, %c0_57] : memref<1x16x128xf32, #tpu.memory_space<vmem>>, vector<1x16x128xf32>
    tpu.vector_store %arg8[%c0_55, %c0_56, %c0_57], %125 {strides = array<i32>} : memref<1x16x128xf32, #tpu.memory_space<vmem>>, vector<1x16x128xf32>,
    return
  }
  func.func @transform_0(%arg0: i32) -> (i32, i32, i32) {
    %c0_i32 = arith.constant 0 : i32
    %c0_i32_0 = arith.constant 0 : i32
    %c0_i32_1 = arith.constant 0 : i32
    return %arg0, %c0_i32, %c0_i32_0 : i32, i32, i32
  }
  func.func @transform_1(%arg0: i32) -> (i32, i32, i32) {
    %c0_i32 = arith.constant 0 : i32
    %c0_i32_0 = arith.constant 0 : i32
    %c0_i32_1 = arith.constant 0 : i32
    %c0_i32_2 = arith.constant 0 : i32
    return %c0_i32, %c0_i32_0, %c0_i32_1 : i32, i32, i32
  }
  func.func @transform_2(%arg0: i32) -> (i32, i32) {
    %c0_i32 = arith.constant 0 : i32
    %c0_i32_0 = arith.constant 0 : i32
    %c0_i32_1 = arith.constant 0 : i32
    return %c0_i32, %c0_i32_0 : i32, i32
  }
  func.func @transform_3(%arg0: i32) -> (i32, i32) {
    %c0_i32 = arith.constant 0 : i32
    %c0_i32_0 = arith.constant 0 : i32
    %c0_i32_1 = arith.constant 0 : i32
    return %c0_i32, %c0_i32_0 : i32, i32
  }
  func.func @transform_4(%arg0: i32) -> (i32, i32) {
    %c0_i32 = arith.constant 0 : i32
    %c0_i32_0 = arith.constant 0 : i32
    %c0_i32_1 = arith.constant 0 : i32
    return %c0_i32, %c0_i32_0 : i32, i32
  }
  func.func @transform_5(%arg0: i32) -> (i32, i32, i32) {
    %c0_i32 = arith.constant 0 : i32
    %c0_i32_0 = arith.constant 0 : i32
    %c0_i32_1 = arith.constant 0 : i32
    %c0_i32_2 = arith.constant 0 : i32
    return %c0_i32, %c0_i32_0, %c0_i32_1 : i32, i32, i32
  }
  func.func @transform_6(%arg0: i32) -> (i32, i32) {
    %c0_i32 = arith.constant 0 : i32
    %c0_i32_0 = arith.constant 0 : i32
    %c0_i32_1 = arith.constant 0 : i32
    return %c0_i32, %c0_i32_0 : i32, i32
  }
  func.func @transform_7(%arg0: i32) -> (i32, i32, i32) {
    %c0_i32 = arith.constant 0 : i32
    %c0_i32_0 = arith.constant 0 : i32
    %c0_i32_1 = arith.constant 0 : i32
    return %arg0, %c0_i32, %c0_i32_0 : i32, i32, i32
  }
}

module attributes {stable_mosaic.version = 11 : i64} {
  func.func @sandglass_kernel(%arg0: i32, %arg1: memref<1x16x128xf32, #tpu.memory_space<vmem>>, %arg2: memref<3x128x128xbf16, #tpu.memory_space<vmem>>, %arg3: memref<1x128xf32, #tpu.memory_space<vmem>>, %arg4: memref<128x128xbf16, #tpu.memory_space<vmem>>, %arg5: memref<1x128xf32, #tpu.memory_space<vmem>>, %arg6: memref<3x128x128xbf16, #tpu.memory_space<vmem>>, %arg7: memref<1x128xf32, #tpu.memory_space<vmem>>, %arg8: memref<1x16x128xf32, #tpu.memory_space<vmem>>) attributes {dimension_semantics = [#tpu.dimension_semantics<parallel>], iteration_bounds = array<i64: 2>, scalar_prefetch = 0 : i64, scratch_operands = 0 : i64, tpu.core_type = #tpu.core_type<tc>, window_params = [{transform_indices = @transform_0, window_bounds = array<i64: 1, 16, 128>}, {pipeline_mode = #tpu.pipeline_mode<synchronous>, transform_indices = @transform_1, window_bounds = array<i64: 3, 128, 128>}, {pipeline_mode = #tpu.pipeline_mode<synchronous>, transform_indices = @transform_2, window_bounds = array<i64: 1, 128>}, {pipeline_mode = #tpu.pipeline_mode<synchronous>, transform_indices = @transform_3, window_bounds = array<i64: 128, 128>}, {pipeline_mode = #tpu.pipeline_mode<synchronous>, transform_indices = @transform_4, window_bounds = array<i64: 1, 128>}, {pipeline_mode = #tpu.pipeline_mode<synchronous>, transform_indices = @transform_5, window_bounds = array<i64: 3, 128, 128>}, {pipeline_mode = #tpu.pipeline_mode<synchronous>, transform_indices = @transform_6, window_bounds = array<i64: 1, 128>}, {transform_indices = @transform_7, window_bounds = array<i64: 1, 16, 128>}]} {
    %c0 = arith.constant 0 : index
    %c0_0 = arith.constant 0 : index
    %c0_1 = arith.constant 0 : index
    %0 = vector.load %arg1[%c0, %c0_0, %c0_1] : memref<1x16x128xf32, #tpu.memory_space<vmem>>, vector<1x16x128xf32>
    %cst = arith.constant 0.000000e+00 : f32
    %1 = vector.broadcast %cst : f32 to vector<16x128xf32>
    %c1_i32 = arith.constant 1 : i32
    %2 = tpu.dynamic_rotate %0 by %c1_i32 dim 1 : vector<1x16x128xf32>, i32 -> vector<1x16x128xf32>
    %3 = tpu.iota {dimensions = array<i32: 1>} : vector<1x16x128xi32>
    %c-1_i32 = arith.constant -1 : i32
    %4 = vector.broadcast %c-1_i32 : i32 to vector<1x16x128xi32>
    %5 = arith.addi %3, %4 : vector<1x16x128xi32>
    %c0_i32 = arith.constant 0 : i32
    %6 = vector.broadcast %c0_i32 : i32 to vector<1x16x128xi32>
    %7 = arith.cmpi sge, %5, %6 : vector<1x16x128xi32>
    %c-1_i32_2 = arith.constant -1 : i32
    %8 = vector.broadcast %c-1_i32_2 : i32 to vector<1x16x128xi32>
    %9 = arith.addi %3, %8 : vector<1x16x128xi32>
    %c16_i32 = arith.constant 16 : i32
    %10 = vector.broadcast %c16_i32 : i32 to vector<1x16x128xi32>
    %11 = arith.cmpi slt, %9, %10 : vector<1x16x128xi32>
    %12 = arith.andi %7, %11 : vector<1x16x128xi1>
    %13 = arith.extui %12 : vector<1x16x128xi1> to vector<1x16x128xi32>
    %14 = arith.sitofp %13 : vector<1x16x128xi32> to vector<1x16x128xf32>
    %15 = arith.mulf %2, %14 : vector<1x16x128xf32>
    %16 = vector.shape_cast %15 : vector<1x16x128xf32> to vector<16x128xf32>
    %17 = arith.truncf %16 : vector<16x128xf32> to vector<16x128xbf16>
    %c0_3 = arith.constant 0 : index
    %c0_4 = arith.constant 0 : index
    %c0_5 = arith.constant 0 : index
    %18 = vector.load %arg2[%c0_3, %c0_4, %c0_5] : memref<3x128x128xbf16, #tpu.memory_space<vmem>>, vector<1x128x128xbf16>
    %19 = vector.shape_cast %18 : vector<1x128x128xbf16> to vector<128x128xbf16>
    %cst_6 = arith.constant dense<0.000000e+00> : vector<16x128xf32>
    %20 = tpu.matmul %17, %19, %cst_6 {dimension_numbers = #tpu.dot_dimension_numbers<[1], [0], [0], [1], [0, 0, 1, 1], [], []>} : vector<16x128xbf16>, vector<128x128xbf16>, vector<16x128xf32> -> vector<16x128xf32>
    %21 = arith.addf %1, %20 : vector<16x128xf32>
    %22 = vector.shape_cast %0 : vector<1x16x128xf32> to vector<16x128xf32>
    %23 = arith.truncf %22 : vector<16x128xf32> to vector<16x128xbf16>
    %c1 = arith.constant 1 : index
    %c0_7 = arith.constant 0 : index
    %c0_8 = arith.constant 0 : index
    %24 = vector.load %arg2[%c1, %c0_7, %c0_8] : memref<3x128x128xbf16, #tpu.memory_space<vmem>>, vector<1x128x128xbf16>
    %25 = vector.shape_cast %24 : vector<1x128x128xbf16> to vector<128x128xbf16>
    %cst_9 = arith.constant dense<0.000000e+00> : vector<16x128xf32>
    %26 = tpu.matmul %23, %25, %cst_9 {dimension_numbers = #tpu.dot_dimension_numbers<[1], [0], [0], [1], [0, 0, 1, 1], [], []>} : vector<16x128xbf16>, vector<128x128xbf16>, vector<16x128xf32> -> vector<16x128xf32>
    %27 = arith.addf %21, %26 : vector<16x128xf32>
    %c15_i32 = arith.constant 15 : i32
    %28 = tpu.dynamic_rotate %0 by %c15_i32 dim 1 : vector<1x16x128xf32>, i32 -> vector<1x16x128xf32>
    %29 = tpu.iota {dimensions = array<i32: 1>} : vector<1x16x128xi32>
    %c1_i32_10 = arith.constant 1 : i32
    %30 = vector.broadcast %c1_i32_10 : i32 to vector<1x16x128xi32>
    %31 = arith.addi %29, %30 : vector<1x16x128xi32>
    %c0_i32_11 = arith.constant 0 : i32
    %32 = vector.broadcast %c0_i32_11 : i32 to vector<1x16x128xi32>
    %33 = arith.cmpi sge, %31, %32 : vector<1x16x128xi32>
    %c1_i32_12 = arith.constant 1 : i32
    %34 = vector.broadcast %c1_i32_12 : i32 to vector<1x16x128xi32>
    %35 = arith.addi %29, %34 : vector<1x16x128xi32>
    %c16_i32_13 = arith.constant 16 : i32
    %36 = vector.broadcast %c16_i32_13 : i32 to vector<1x16x128xi32>
    %37 = arith.cmpi slt, %35, %36 : vector<1x16x128xi32>
    %38 = arith.andi %33, %37 : vector<1x16x128xi1>
    %39 = arith.extui %38 : vector<1x16x128xi1> to vector<1x16x128xi32>
    %40 = arith.sitofp %39 : vector<1x16x128xi32> to vector<1x16x128xf32>
    %41 = arith.mulf %28, %40 : vector<1x16x128xf32>
    %42 = vector.shape_cast %41 : vector<1x16x128xf32> to vector<16x128xf32>
    %43 = arith.truncf %42 : vector<16x128xf32> to vector<16x128xbf16>
    %c2 = arith.constant 2 : index
    %c0_14 = arith.constant 0 : index
    %c0_15 = arith.constant 0 : index
    %44 = vector.load %arg2[%c2, %c0_14, %c0_15] : memref<3x128x128xbf16, #tpu.memory_space<vmem>>, vector<1x128x128xbf16>
    %45 = vector.shape_cast %44 : vector<1x128x128xbf16> to vector<128x128xbf16>
    %cst_16 = arith.constant dense<0.000000e+00> : vector<16x128xf32>
    %46 = tpu.matmul %43, %45, %cst_16 {dimension_numbers = #tpu.dot_dimension_numbers<[1], [0], [0], [1], [0, 0, 1, 1], [], []>} : vector<16x128xbf16>, vector<128x128xbf16>, vector<16x128xf32> -> vector<16x128xf32>
    %47 = arith.addf %27, %46 : vector<16x128xf32>
    %48 = vector.shape_cast %47 : vector<16x128xf32> to vector<1x16x128xf32>
    %c0_17 = arith.constant 0 : index
    %c0_18 = arith.constant 0 : index
    %49 = vector.load %arg3[%c0_17, %c0_18] : memref<1x128xf32, #tpu.memory_space<vmem>>, vector<1x128xf32>
    %50 = vector.shape_cast %49 : vector<1x128xf32> to vector<1x1x128xf32>
    %51 = vector.broadcast %50 : vector<1x1x128xf32> to vector<1x16x128xf32>
    %52 = arith.addf %48, %51 : vector<1x16x128xf32>
    %cst_19 = arith.constant 0.000000e+00 : f32
    %cst_20 = arith.constant 6.000000e+00 : f32
    %53 = vector.broadcast %cst_19 : f32 to vector<1x16x128xf32>
    %54 = arith.maximumf %53, %52 : vector<1x16x128xf32>
    %55 = vector.broadcast %cst_20 : f32 to vector<1x16x128xf32>
    %56 = arith.minimumf %55, %54 : vector<1x16x128xf32>
    %57 = vector.shape_cast %56 : vector<1x16x128xf32> to vector<16x128xf32>
    %58 = arith.truncf %57 : vector<16x128xf32> to vector<16x128xbf16>
    %c0_21 = arith.constant 0 : index
    %c0_22 = arith.constant 0 : index
    %59 = vector.load %arg4[%c0_21, %c0_22] : memref<128x128xbf16, #tpu.memory_space<vmem>>, vector<128x128xbf16>
    %cst_23 = arith.constant dense<0.000000e+00> : vector<16x128xf32>
    %60 = tpu.matmul %58, %59, %cst_23 {dimension_numbers = #tpu.dot_dimension_numbers<[1], [0], [0], [1], [0, 0, 1, 1], [], []>} : vector<16x128xbf16>, vector<128x128xbf16>, vector<16x128xf32> -> vector<16x128xf32>
    %c0_24 = arith.constant 0 : index
    %c0_25 = arith.constant 0 : index
    %61 = vector.load %arg5[%c0_24, %c0_25] : memref<1x128xf32, #tpu.memory_space<vmem>>, vector<1x128xf32>
    %62 = vector.broadcast %61 : vector<1x128xf32> to vector<16x128xf32>
    %63 = arith.addf %60, %62 : vector<16x128xf32>
    %cst_26 = arith.constant 0.000000e+00 : f32
    %cst_27 = arith.constant 6.000000e+00 : f32
    %64 = vector.broadcast %cst_26 : f32 to vector<16x128xf32>
    %65 = arith.maximumf %64, %63 : vector<16x128xf32>
    %66 = vector.broadcast %cst_27 : f32 to vector<16x128xf32>
    %67 = arith.minimumf %66, %65 : vector<16x128xf32>
    %68 = vector.shape_cast %67 : vector<16x128xf32> to vector<1x16x128xf32>
    %cst_28 = arith.constant 0.000000e+00 : f32
    %69 = vector.broadcast %cst_28 : f32 to vector<16x128xf32>
    %c1_i32_29 = arith.constant 1 : i32
    %70 = tpu.dynamic_rotate %68 by %c1_i32_29 dim 1 : vector<1x16x128xf32>, i32 -> vector<1x16x128xf32>
    %71 = tpu.iota {dimensions = array<i32: 1>} : vector<1x16x128xi32>
    %c-1_i32_30 = arith.constant -1 : i32
    %72 = vector.broadcast %c-1_i32_30 : i32 to vector<1x16x128xi32>
    %73 = arith.addi %71, %72 : vector<1x16x128xi32>
    %c0_i32_31 = arith.constant 0 : i32
    %74 = vector.broadcast %c0_i32_31 : i32 to vector<1x16x128xi32>
    %75 = arith.cmpi sge, %73, %74 : vector<1x16x128xi32>
    %c-1_i32_32 = arith.constant -1 : i32
    %76 = vector.broadcast %c-1_i32_32 : i32 to vector<1x16x128xi32>
    %77 = arith.addi %71, %76 : vector<1x16x128xi32>
    %c16_i32_33 = arith.constant 16 : i32
    %78 = vector.broadcast %c16_i32_33 : i32 to vector<1x16x128xi32>
    %79 = arith.cmpi slt, %77, %78 : vector<1x16x128xi32>
    %80 = arith.andi %75, %79 : vector<1x16x128xi1>
    %81 = arith.extui %80 : vector<1x16x128xi1> to vector<1x16x128xi32>
    %82 = arith.sitofp %81 : vector<1x16x128xi32> to vector<1x16x128xf32>
    %83 = arith.mulf %70, %82 : vector<1x16x128xf32>
    %84 = vector.shape_cast %83 : vector<1x16x128xf32> to vector<16x128xf32>
    %85 = arith.truncf %84 : vector<16x128xf32> to vector<16x128xbf16>
    %c0_34 = arith.constant 0 : index
    %c0_35 = arith.constant 0 : index
    %c0_36 = arith.constant 0 : index
    %86 = vector.load %arg6[%c0_34, %c0_35, %c0_36] : memref<3x128x128xbf16, #tpu.memory_space<vmem>>, vector<1x128x128xbf16>
    %87 = vector.shape_cast %86 : vector<1x128x128xbf16> to vector<128x128xbf16>
    %cst_37 = arith.constant dense<0.000000e+00> : vector<16x128xf32>
    %88 = tpu.matmul %85, %87, %cst_37 {dimension_numbers = #tpu.dot_dimension_numbers<[1], [0], [0], [1], [0, 0, 1, 1], [], []>} : vector<16x128xbf16>, vector<128x128xbf16>, vector<16x128xf32> -> vector<16x128xf32>
    %89 = arith.addf %69, %88 : vector<16x128xf32>
    %90 = vector.shape_cast %68 : vector<1x16x128xf32> to vector<16x128xf32>
    %91 = arith.truncf %90 : vector<16x128xf32> to vector<16x128xbf16>
    %c1_38 = arith.constant 1 : index
    %c0_39 = arith.constant 0 : index
    %c0_40 = arith.constant 0 : index
    %92 = vector.load %arg6[%c1_38, %c0_39, %c0_40] : memref<3x128x128xbf16, #tpu.memory_space<vmem>>, vector<1x128x128xbf16>
    %93 = vector.shape_cast %92 : vector<1x128x128xbf16> to vector<128x128xbf16>
    %cst_41 = arith.constant dense<0.000000e+00> : vector<16x128xf32>
    %94 = tpu.matmul %91, %93, %cst_41 {dimension_numbers = #tpu.dot_dimension_numbers<[1], [0], [0], [1], [0, 0, 1, 1], [], []>} : vector<16x128xbf16>, vector<128x128xbf16>, vector<16x128xf32> -> vector<16x128xf32>
    %95 = arith.addf %89, %94 : vector<16x128xf32>
    %c15_i32_42 = arith.constant 15 : i32
    %96 = tpu.dynamic_rotate %68 by %c15_i32_42 dim 1 : vector<1x16x128xf32>, i32 -> vector<1x16x128xf32>
    %97 = tpu.iota {dimensions = array<i32: 1>} : vector<1x16x128xi32>
    %c1_i32_43 = arith.constant 1 : i32
    %98 = vector.broadcast %c1_i32_43 : i32 to vector<1x16x128xi32>
    %99 = arith.addi %97, %98 : vector<1x16x128xi32>
    %c0_i32_44 = arith.constant 0 : i32
    %100 = vector.broadcast %c0_i32_44 : i32 to vector<1x16x128xi32>
    %101 = arith.cmpi sge, %99, %100 : vector<1x16x128xi32>
    %c1_i32_45 = arith.constant 1 : i32
    %102 = vector.broadcast %c1_i32_45 : i32 to vector<1x16x128xi32>
    %103 = arith.addi %97, %102 : vector<1x16x128xi32>
    %c16_i32_46 = arith.constant 16 : i32
    %104 = vector.broadcast %c16_i32_46 : i32 to vector<1x16x128xi32>
    %105 = arith.cmpi slt, %103, %104 : vector<1x16x128xi32>
    %106 = arith.andi %101, %105 : vector<1x16x128xi1>
    %107 = arith.extui %106 : vector<1x16x128xi1> to vector<1x16x128xi32>
    %108 = arith.sitofp %107 : vector<1x16x128xi32> to vector<1x16x128xf32>
    %109 = arith.mulf %96, %108 : vector<1x16x128xf32>
    %110 = vector.shape_cast %109 : vector<1x16x128xf32> to vector<16x128xf32>
    %111 = arith.truncf %110 : vector<16x128xf32> to vector<16x128xbf16>
    %c2_47 = arith.constant 2 : index
    %c0_48 = arith.constant 0 : index
    %c0_49 = arith.constant 0 : index
    %112 = vector.load %arg6[%c2_47, %c0_48, %c0_49] : memref<3x128x128xbf16, #tpu.memory_space<vmem>>, vector<1x128x128xbf16>
    %113 = vector.shape_cast %112 : vector<1x128x128xbf16> to vector<128x128xbf16>
    %cst_50 = arith.constant dense<0.000000e+00> : vector<16x128xf32>
    %114 = tpu.matmul %111, %113, %cst_50 {dimension_numbers = #tpu.dot_dimension_numbers<[1], [0], [0], [1], [0, 0, 1, 1], [], []>} : vector<16x128xbf16>, vector<128x128xbf16>, vector<16x128xf32> -> vector<16x128xf32>
    %115 = arith.addf %95, %114 : vector<16x128xf32>
    %116 = vector.shape_cast %115 : vector<16x128xf32> to vector<1x16x128xf32>
    %c0_51 = arith.constant 0 : index
    %c0_52 = arith.constant 0 : index
    %117 = vector.load %arg7[%c0_51, %c0_52] : memref<1x128xf32, #tpu.memory_space<vmem>>, vector<1x128xf32>
    %118 = vector.shape_cast %117 : vector<1x128xf32> to vector<1x1x128xf32>
    %119 = vector.broadcast %118 : vector<1x1x128xf32> to vector<1x16x128xf32>
    %120 = arith.addf %116, %119 : vector<1x16x128xf32>
    %cst_53 = arith.constant 0.000000e+00 : f32
    %cst_54 = arith.constant 6.000000e+00 : f32
    %121 = vector.broadcast %cst_53 : f32 to vector<1x16x128xf32>
    %122 = arith.maximumf %121, %120 : vector<1x16x128xf32>
    %123 = vector.broadcast %cst_54 : f32 to vector<1x16x128xf32>
    %124 = arith.minimumf %123, %122 : vector<1x16x128xf32>
    %125 = arith.addf %124, %0 : vector<1x16x128xf32>
    %c0_55 = arith.constant 0 : index
    %c0_56 = arith.constant 0 : index
    %c0_57 = arith.constant 0 : index
    %126 = vector.load %arg8[%c0_55, %c0_56, %c0_57] : memref<1x16x128xf32, #tpu.memory_space<vmem>>, vector<1x16x128xf32>
    tpu.vector_store %arg8[%c0_55, %c0_56, %c0_57], %125 {strides = array<i32>} : memref<1x16x128xf32, #tpu.memory_space<vmem>>, vector<1x16x128xf32>,
    return
  }
  func.func @transform_0(%arg0: i32) -> (i32, i32, i32) {
    %c0_i32 = arith.constant 0 : i32
    %c0_i32_0 = arith.constant 0 : i32
    %c0_i32_1 = arith.constant 0 : i32
    return %arg0, %c0_i32, %c0_i32_0 : i32, i32, i32
  }
  func.func @transform_1(%arg0: i32) -> (i32, i32, i32) {
    %c0_i32 = arith.constant 0 : i32
    %c0_i32_0 = arith.constant 0 : i32
    %c0_i32_1 = arith.constant 0 : i32
    %c0_i32_2 = arith.constant 0 : i32
    return %c0_i32, %c0_i32_0, %c0_i32_1 : i32, i32, i32
  }
  func.func @transform_2(%arg0: i32) -> (i32, i32) {
    %c0_i32 = arith.constant 0 : i32
    %c0_i32_0 = arith.constant 0 : i32
    %c0_i32_1 = arith.constant 0 : i32
    return %c0_i32, %c0_i32_0 : i32, i32
  }
  func.func @transform_3(%arg0: i32) -> (i32, i32) {
    %c0_i32 = arith.constant 0 : i32
    %c0_i32_0 = arith.constant 0 : i32
    %c0_i32_1 = arith.constant 0 : i32
    return %c0_i32, %c0_i32_0 : i32, i32
  }
  func.func @transform_4(%arg0: i32) -> (i32, i32) {
    %c0_i32 = arith.constant 0 : i32
    %c0_i32_0 = arith.constant 0 : i32
    %c0_i32_1 = arith.constant 0 : i32
    return %c0_i32, %c0_i32_0 : i32, i32
  }
  func.func @transform_5(%arg0: i32) -> (i32, i32, i32) {
    %c0_i32 = arith.constant 0 : i32
    %c0_i32_0 = arith.constant 0 : i32
    %c0_i32_1 = arith.constant 0 : i32
    %c0_i32_2 = arith.constant 0 : i32
    return %c0_i32, %c0_i32_0, %c0_i32_1 : i32, i32, i32
  }
  func.func @transform_6(%arg0: i32) -> (i32, i32) {
    %c0_i32 = arith.constant 0 : i32
    %c0_i32_0 = arith.constant 0 : i32
    %c0_i32_1 = arith.constant 0 : i32
    return %c0_i32, %c0_i32_0 : i32, i32
  }
  func.func @transform_7(%arg0: i32) -> (i32, i32, i32) {
    %c0_i32 = arith.constant 0 : i32
    %c0_i32_0 = arith.constant 0 : i32
    %c0_i32_1 = arith.constant 0 : i32
    return %arg0, %c0_i32, %c0_i32_0 : i32, i32, i32
  }
}

</mosaic_0001>

<llo_original>
// kernel: tpu_custom_call.1
$region0: #{tpu_custom_call.1}
  #allocation0 [shape = 'u32[]', space=smem, size = 0x4, offset = 0x4, fixed_abs, tag = 'smem constant byte address 0x4 - core index']
  #allocation1 [shape = 'u32[72,128]{1,0:T(1,128)}', space=vmem, size = 0x9000, scoped, tag = 'internal scratch']
  %s0 = inlined_call_operand.hbm [shape: f32[2,16,128], index: 0, kind: input, shape index: {}]
  %s1 = inlined_call_operand.hbm [shape: bf16[3,128,128], index: 1, kind: input, shape index: {}]
  %s2 = inlined_call_operand.vmem [shape: f32[1,128], index: 2, kind: input, shape index: {}]
  %s3 = inlined_call_operand.hbm [shape: bf16[128,128], index: 3, kind: input, shape index: {}]
  %s4 = inlined_call_operand.vmem [shape: f32[1,128], index: 4, kind: input, shape index: {}]
  %s5 = inlined_call_operand.hbm [shape: bf16[3,128,128], index: 5, kind: input, shape index: {}]
  %s6 = inlined_call_operand.vmem [shape: f32[1,128], index: 6, kind: input, shape index: {}]
  %s7 = inlined_call_operand.hbm [shape: f32[2,16,128], index: 7, kind: output, shape index: {}]
  %s8 = sld [smem:[#allocation0]]
  $region77: #{tpu_custom_call.1} parent=0
    _
  %s10 = ssub.s32 1, %s8
  %s11 = scalar_select 0, %s10, %s8
  $region1: #{tpu_custom_call.1} parent=0
    #allocation2 [shape = 'u8[16384]{0}', space=vmem, size = 0x4000, scoped, tag = 'input window, operand 0']
    #allocation3 [shape = 's32[2]{0}', space=sflag, size = 0x8, scoped, tag = 'scoped memory for tpu_custom_call.1']
    #allocation4 [shape = 's32[2]{0}', space=sflag, size = 0x8, scoped, tag = 'scoped memory for tpu_custom_call.1']
    #allocation5 [shape = 'u8[98304]{0}', space=vmem, size = 0x18000, scoped, tag = 'input window, operand 1, single buffered']
    #allocation6 [shape = 's32[1]{0}', space=sflag, size = 0x4, scoped, tag = 'scoped memory for tpu_custom_call.1']
    #allocation7 [shape = 'u8[32768]{0}', space=vmem, size = 0x8000, scoped, tag = 'input window, operand 3, single buffered']
    #allocation8 [shape = 'u8[98304]{0}', space=vmem, size = 0x18000, scoped, tag = 'input window, operand 5, single buffered']
    #allocation9 [shape = 's32[1]{0}', space=sflag, size = 0x4, scoped, tag = 'scoped memory for tpu_custom_call.1']
    #allocation10 [shape = 'u8[16384]{0}', space=vmem, size = 0x4000, scoped, tag = 'output window, operand 0']
    %12 = vsyncpa [#allocation3], 0
    %s13 = scalar_lea.sflag [#allocation3], 1
    %14 = vsyncpa %s13, 0
    %15 = vsyncpa [#allocation6], 0
    %16 = vsyncpa [#allocation9], 0
    %17 = vsyncpa [#allocation4], 0
    %s18 = scalar_lea.sflag [#allocation4], 1
    %19 = vsyncpa %s18, 0
    loop: start=0, step=1, limit=4
    $region2: #{tpu_custom_call.1} parent=1 // loop_pre_header
      _
    $region3: #{tpu_custom_call.1} parent=1 // loop_header
      %s21 = sphi 0, %s25
      %p22 = scmp.ge.s32.totalorder %s21, 4
      %s31 = sphi 0, %s33
      %s34 = sphi 0, %s31
      %s35 = sphi 0, %s34
      %s51 = sphi 0, %s35
      %s55 = sphi 0, %s55
      %s57 = sphi 0, %s55
      %s58 = sphi 0, %s57
      %s72 = sphi 0, %s58
      %s76 = sphi 0, %s76
      %s78 = sphi 0, %s76
      %s79 = sphi 0, %s78
      %s93 = sphi 0, %s79
      %s97 = sphi 0, %s97
      %s99 = sphi 0, %s97
      %s100 = sphi 0, %s99
      %s114 = sphi 0, %s100
      %s118 = sphi 0, %s118
      %s120 = sphi 0, %s118
      %s121 = sphi 0, %s120
      %s135 = sphi 0, %s121
      %s139 = sphi 0, %s139
      %s141 = sphi 0, %s139
      %s142 = sphi 0, %s141
      %s156 = sphi 0, %s142
      %s160 = sphi 0, %s160
      %s162 = sphi 0, %s160
      %s163 = sphi 0, %s162
      %s177 = sphi 0, %s163
      %s183 = sphi 0, %s185
      %s186 = sphi 0, %s183
      %s187 = sphi 0, %s186
      %s203 = sphi 0, %s187
    $region4: #{tpu_custom_call.1} parent=1 // loop_header_branch
      %24 = sbr.rel (%p22) target = $region8
    $region5: #{tpu_custom_call.1} parent=1 // loop_body
      %s26 = ssub.s32 %s21, 1
      %s27 = ssub.s32 %s21, 2
      %s28 = sadd.s32 %s21, 1
      %s29 = ssub.s32 %s21, %s28
      %p30 = scmp.eq.s32.totalorder %s29, 0
      %s32 = sadd.s32 %s31, 1
      %s33 = scalar_select %p30, %s31, %s32
      %p36 = pneg %p30
      %p37 = scmp.eq.s32.totalorder %s21, 1
      %p38 = por %p36, %p37
      %p39 = scmp.ne.s32.totalorder %s31, %s34
      %p40 = scmp.eq.s32.totalorder %s21, 0
      %p41 = por %p39, %p40
      %p42 = scmp.ne.s32.totalorder %s31, %s34
      %p43 = scmp.eq.s32.totalorder %s26, 1
      %p44 = por %p42, %p43
      %p45 = scmp.ne.s32.totalorder %s34, %s35
      %p46 = scmp.eq.s32.totalorder %s26, 0
      %p47 = por %p45, %p46
      %p48 = scmp.ne.s32.totalorder %s34, %s35
      %p49 = scmp.eq.s32.totalorder %s27, 1
      %p50 = por %p48, %p49
      %p52 = scmp.ne.s32.totalorder %s35, %s51
      %p53 = scmp.eq.s32.totalorder %s27, 0
      %p54 = por %p52, %p53
      %s56 = sadd.s32 %s55, 1
      %p59 = scmp.eq.s32.totalorder %s21, 1
      %p60 = scmp.ne.s32.totalorder %s55, %s57
      %p61 = scmp.eq.s32.totalorder %s21, 0
      %p62 = por %p60, %p61
      %p63 = scmp.ne.s32.totalorder %s55, %s57
      %p64 = scmp.eq.s32.totalorder %s26, 1
      %p65 = por %p63, %p64
      %p66 = scmp.ne.s32.totalorder %s57, %s58
      %p67 = scmp.eq.s32.totalorder %s26, 0
      %p68 = por %p66, %p67
      %p69 = scmp.ne.s32.totalorder %s57, %s58
      %p70 = scmp.eq.s32.totalorder %s27, 1
      %p71 = por %p69, %p70
      %p73 = scmp.ne.s32.totalorder %s58, %s72
      %p74 = scmp.eq.s32.totalorder %s27, 0
      %p75 = por %p73, %p74
      %s77 = sadd.s32 %s76, 1
      %p80 = scmp.eq.s32.totalorder %s21, 1
      %p81 = scmp.ne.s32.totalorder %s76, %s78
      %p82 = scmp.eq.s32.totalorder %s21, 0
      %p83 = por %p81, %p82
      %p84 = scmp.ne.s32.totalorder %s76, %s78
      %p85 = scmp.eq.s32.totalorder %s26, 1
      %p86 = por %p84, %p85
      %p87 = scmp.ne.s32.totalorder %s78, %s79
      %p88 = scmp.eq.s32.totalorder %s26, 0
      %p89 = por %p87, %p88
      %p90 = scmp.ne.s32.totalorder %s78, %s79
      %p91 = scmp.eq.s32.totalorder %s27, 1
      %p92 = por %p90, %p91
      %p94 = scmp.ne.s32.totalorder %s79, %s93
      %p95 = scmp.eq.s32.totalorder %s27, 0
      %p96 = por %p94, %p95
      %s98 = sadd.s32 %s97, 1
      %p101 = scmp.eq.s32.totalorder %s21, 1
      %p102 = scmp.ne.s32.totalorder %s97, %s99
      %p103 = scmp.eq.s32.totalorder %s21, 0
      %p104 = por %p102, %p103
      %p105 = scmp.ne.s32.totalorder %s97, %s99
      %p106 = scmp.eq.s32.totalorder %s26, 1
      %p107 = por %p105, %p106
      %p108 = scmp.ne.s32.totalorder %s99, %s100
      %p109 = scmp.eq.s32.totalorder %s26, 0
      %p110 = por %p108, %p109
      %p111 = scmp.ne.s32.totalorder %s99, %s100
      %p112 = scmp.eq.s32.totalorder %s27, 1
      %p113 = por %p111, %p112
      %p115 = scmp.ne.s32.totalorder %s100, %s114
      %p116 = scmp.eq.s32.totalorder %s27, 0
      %p117 = por %p115, %p116
      %s119 = sadd.s32 %s118, 1
      %p122 = scmp.eq.s32.totalorder %s21, 1
      %p123 = scmp.ne.s32.totalorder %s118, %s120
      %p124 = scmp.eq.s32.totalorder %s21, 0
      %p125 = por %p123, %p124
      %p126 = scmp.ne.s32.totalorder %s118, %s120
      %p127 = scmp.eq.s32.totalorder %s26, 1
      %p128 = por %p126, %p127
      %p129 = scmp.ne.s32.totalorder %s120, %s121
      %p130 = scmp.eq.s32.totalorder %s26, 0
      %p131 = por %p129, %p130
      %p132 = scmp.ne.s32.totalorder %s120, %s121
      %p133 = scmp.eq.s32.totalorder %s27, 1
      %p134 = por %p132, %p133
      %p136 = scmp.ne.s32.totalorder %s121, %s135
      %p137 = scmp.eq.s32.totalorder %s27, 0
      %p138 = por %p136, %p137
      %s140 = sadd.s32 %s139, 1
      %p143 = scmp.eq.s32.totalorder %s21, 1
      %p144 = scmp.ne.s32.totalorder %s139, %s141
      %p145 = scmp.eq.s32.totalorder %s21, 0
      %p146 = por %p144, %p145
      %p147 = scmp.ne.s32.totalorder %s139, %s141
      %p148 = scmp.eq.s32.totalorder %s26, 1
      %p149 = por %p147, %p148
      %p150 = scmp.ne.s32.totalorder %s141, %s142
      %p151 = scmp.eq.s32.totalorder %s26, 0
      %p152 = por %p150, %p151
      %p153 = scmp.ne.s32.totalorder %s141, %s142
      %p154 = scmp.eq.s32.totalorder %s27, 1
      %p155 = por %p153, %p154
      %p157 = scmp.ne.s32.totalorder %s142, %s156
      %p158 = scmp.eq.s32.totalorder %s27, 0
      %p159 = por %p157, %p158
      %s161 = sadd.s32 %s160, 1
      %p164 = scmp.eq.s32.totalorder %s21, 1
      %p165 = scmp.ne.s32.totalorder %s160, %s162
      %p166 = scmp.eq.s32.totalorder %s21, 0
      %p167 = por %p165, %p166
      %p168 = scmp.ne.s32.totalorder %s160, %s162
      %p169 = scmp.eq.s32.totalorder %s26, 1
      %p170 = por %p168, %p169
      %p171 = scmp.ne.s32.totalorder %s162, %s163
      %p172 = scmp.eq.s32.totalorder %s26, 0
      %p173 = por %p171, %p172
      %p174 = scmp.ne.s32.totalorder %s162, %s163
      %p175 = scmp.eq.s32.totalorder %s27, 1
      %p176 = por %p174, %p175
      %p178 = scmp.ne.s32.totalorder %s163, %s177
      %p179 = scmp.eq.s32.totalorder %s27, 0
      %p180 = por %p178, %p179
      %s181 = ssub.s32 %s21, %s28
      %p182 = scmp.eq.s32.totalorder %s181, 0
      %s184 = sadd.s32 %s183, 1
      %s185 = scalar_select %p182, %s183, %s184
      %p188 = pneg %p182
      %p189 = scmp.eq.s32.totalorder %s21, 1
      %p190 = por %p188, %p189
      %p191 = scmp.ne.s32.totalorder %s183, %s186
      %p192 = scmp.eq.s32.totalorder %s21, 0
      %p193 = por %p191, %p192
      %p194 = scmp.ne.s32.totalorder %s183, %s186
      %p195 = scmp.eq.s32.totalorder %s26, 1
      %p196 = por %p194, %p195
      %p197 = scmp.ne.s32.totalorder %s186, %s187
      %p198 = scmp.eq.s32.totalorder %s26, 0
      %p199 = por %p197, %p198
      %p200 = scmp.ne.s32.totalorder %s186, %s187
      %p201 = scmp.eq.s32.totalorder %s27, 1
      %p202 = por %p200, %p201
      %p204 = scmp.ne.s32.totalorder %s187, %s203
      %p205 = scmp.eq.s32.totalorder %s27, 0
      %p206 = por %p204, %p205
      %p207 = scmp.le.s32.totalorder 1, %s21
      %p208 = scmp.lt.s32.totalorder %s21, 3
      %p209 = pnand %p207, %p208
      %p210 = pneg %p209
      // Predicated region
      $region9: #{tpu_custom_call.1} parent=5 // pred_check
        _
      $region10: #{tpu_custom_call.1} parent=5 // pred_check_branch
        %212 = sbr.rel (%p209) target = $region12
      $region11: #{tpu_custom_call.1} parent=5 // pred_region
        %s213 = ssub.s32 %s21, 1
        // Predicated region
        $region13: #{tpu_custom_call.1} parent=11 // pred_check
          %p214 = pneg %p68
        $region14: #{tpu_custom_call.1} parent=11 // pred_check_branch
          %216 = sbr.rel (%p214) target = $region16
        $region15: #{tpu_custom_call.1} parent=11 // pred_region
          %218 = vsyncadd [#allocation6], 0
          %s219 = sshll.u32 %s1, 4
          %s220 = int_to_ptr.hbm [resolvable:$true] %s219
          %s221 = sshll.u32 [#allocation5], 4
          %s222 = int_to_ptr.vmem [resolvable:$true] %s221
          %227 = dma.hbm_to_vmem [thread:$0]  %s220, 3072, %s222, [#allocation6], 64, 64, 4
        $region16: #{tpu_custom_call.1} parent=11 // pred_fallthru
          _
        // Predicated region
        $region17: #{tpu_custom_call.1} parent=11 // pred_check
          %p228 = pneg %p89
        $region18: #{tpu_custom_call.1} parent=11 // pred_check_branch
          %230 = sbr.rel (%p228) target = $region20
        $region19: #{tpu_custom_call.1} parent=11 // pred_region
          _
        $region20: #{tpu_custom_call.1} parent=11 // pred_fallthru
          _
        // Predicated region
        $region21: #{tpu_custom_call.1} parent=11 // pred_check
          %p231 = pneg %p110
        $region22: #{tpu_custom_call.1} parent=11 // pred_check_branch
          %233 = sbr.rel (%p231) target = $region24
        $region23: #{tpu_custom_call.1} parent=11 // pred_region
          %235 = vsyncadd [#allocation6], 0
          %s236 = sshll.u32 %s3, 4
          %s237 = int_to_ptr.hbm [resolvable:$true] %s236
          %s238 = sshll.u32 [#allocation7], 4
          %s239 = int_to_ptr.vmem [resolvable:$true] %s238
          %244 = dma.hbm_to_vmem [thread:$0]  %s237, 1024, %s239, [#allocation6], 64, 64, 4
        $region24: #{tpu_custom_call.1} parent=11 // pred_fallthru
          _
        // Predicated region
        $region25: #{tpu_custom_call.1} parent=11 // pred_check
          %p245 = pneg %p131
        $region26: #{tpu_custom_call.1} parent=11 // pred_check_branch
          %247 = sbr.rel (%p245) target = $region28
        $region27: #{tpu_custom_call.1} parent=11 // pred_region
          _
        $region28: #{tpu_custom_call.1} parent=11 // pred_fallthru
          _
        // Predicated region
        $region29: #{tpu_custom_call.1} parent=11 // pred_check
          %p248 = pneg %p152
        $region30: #{tpu_custom_call.1} parent=11 // pred_check_branch
          %250 = sbr.rel (%p248) target = $region32
        $region31: #{tpu_custom_call.1} parent=11 // pred_region
          %252 = vsyncadd [#allocation9], 0
          %s253 = sshll.u32 %s5, 4
          %s254 = int_to_ptr.hbm [resolvable:$true] %s253
          %s255 = sshll.u32 [#allocation8], 4
          %s256 = int_to_ptr.vmem [resolvable:$true] %s255
          %261 = dma.hbm_to_vmem [thread:$0]  %s254, 3072, %s256, [#allocation9], 64, 64, 4
        $region32: #{tpu_custom_call.1} parent=11 // pred_fallthru
          _
        // Predicated region
        $region33: #{tpu_custom_call.1} parent=11 // pred_check
          %p262 = pneg %p173
        $region34: #{tpu_custom_call.1} parent=11 // pred_check_branch
          %264 = sbr.rel (%p262) target = $region36
        $region35: #{tpu_custom_call.1} parent=11 // pred_region
          _
        $region36: #{tpu_custom_call.1} parent=11 // pred_fallthru
          _
      $region12: #{tpu_custom_call.1} parent=5 // pred_fallthru
        _
      %p265 = scmp.lt.s32.totalorder %s21, 2
      // Predicated region
      $region37: #{tpu_custom_call.1} parent=5 // pred_check
        %p266 = pneg %p265
      $region38: #{tpu_custom_call.1} parent=5 // pred_check_branch
        %268 = sbr.rel (%p266) target = $region40
      $region39: #{tpu_custom_call.1} parent=5 // pred_region
        // Predicated region
        $region41: #{tpu_custom_call.1} parent=39 // pred_check
          %p269 = pneg %p41
        $region42: #{tpu_custom_call.1} parent=39 // pred_check_branch
          %271 = sbr.rel (%p269) target = $region44
        $region43: #{tpu_custom_call.1} parent=39 // pred_region
          %s272 = sand.u32 %s31, 1
          %s273 = scalar_lea.sflag [#allocation3], %s272
          %s274 = sand.u32 %s31, 1
          %s275 = smul.addr %s274, 16
          %s276 = scalar_lea.vmem [#allocation2], %s275
          %278 = vsyncadd %s273, 0
          %s279 = smul.addr %s21, 2
          %s280 = smul.addr %s279, 8
          %s281 = scalar_lea.hbm %s0, %s280
          %s282 = sshll.u32 %s281, 4
          %s283 = int_to_ptr.hbm [resolvable:$true] %s282
          %s284 = sshll.u32 %s276, 4
          %s285 = int_to_ptr.vmem [resolvable:$true] %s284
          %290 = dma.hbm_to_vmem [thread:$0]  %s283, 256, %s285, %s273, 128, 128, 8
        $region44: #{tpu_custom_call.1} parent=39 // pred_fallthru
          _
      $region40: #{tpu_custom_call.1} parent=5 // pred_fallthru
        _
      %p291 = scmp.le.s32.totalorder 1, %s21
      %p292 = scmp.lt.s32.totalorder %s21, 3
      %p293 = pnand %p291, %p292
      %p294 = pneg %p293
      // Predicated region
      $region45: #{tpu_custom_call.1} parent=5 // pred_check
        _
      $region46: #{tpu_custom_call.1} parent=5 // pred_check_branch
        %296 = sbr.rel (%p293) target = $region48
      $region47: #{tpu_custom_call.1} parent=5 // pred_region
        %s297 = ssub.s32 %s21, 1
        %s298 = sand.u32 %s34, 1
        %s299 = scalar_lea.sflag [#allocation3], %s298
        %s300 = sand.u32 %s34, 1
        %s301 = smul.addr %s300, 16
        %s302 = scalar_lea.vmem [#allocation2], %s301
        // Predicated region
        $region49: #{tpu_custom_call.1} parent=47 // pred_check
          %p303 = pneg %p47
        $region50: #{tpu_custom_call.1} parent=47 // pred_check_branch
          %305 = sbr.rel (%p303) target = $region52
        $region51: #{tpu_custom_call.1} parent=47 // pred_region
          %307 = dma.done %s299, 256
        $region52: #{tpu_custom_call.1} parent=47 // pred_fallthru
          _
        // Predicated region
        $region53: #{tpu_custom_call.1} parent=47 // pred_check
          %p308 = pneg %p68
        $region54: #{tpu_custom_call.1} parent=47 // pred_check_branch
          %310 = sbr.rel (%p308) target = $region56
        $region55: #{tpu_custom_call.1} parent=47 // pred_region
          %312 = dma.done [#allocation6], 3072
        $region56: #{tpu_custom_call.1} parent=47 // pred_fallthru
          _
        // Predicated region
        $region57: #{tpu_custom_call.1} parent=47 // pred_check
          %p313 = pneg %p110
        $region58: #{tpu_custom_call.1} parent=47 // pred_check_branch
          %315 = sbr.rel (%p313) target = $region60
        $region59: #{tpu_custom_call.1} parent=47 // pred_region
          %317 = dma.done [#allocation6], 1024
        $region60: #{tpu_custom_call.1} parent=47 // pred_fallthru
          _
        // Predicated region
        $region61: #{tpu_custom_call.1} parent=47 // pred_check
          %p318 = pneg %p152
        $region62: #{tpu_custom_call.1} parent=47 // pred_check_branch
          %320 = sbr.rel (%p318) target = $region64
        $region63: #{tpu_custom_call.1} parent=47 // pred_region
          %322 = dma.done [#allocation9], 3072
        $region64: #{tpu_custom_call.1} parent=47 // pred_fallthru
          _
        %s323 = sand.u32 %s34, 1
        %s324 = scalar_lea.sflag [#allocation3], %s323
        %s325 = sand.u32 %s34, 1
        %s326 = smul.addr %s325, 16
        %s327 = scalar_lea.vmem [#allocation2], %s326
        %p328 = pneg %p47
        %p329 = pneg %p44
        %p330 = pneg %p68
        %p331 = pneg %p65
        %p332 = pneg %p89
        %p333 = pneg %p86
        %p334 = pneg %p110
        %p335 = pneg %p107
        %p336 = pneg %p131
        %p337 = pneg %p128
        %p338 = pneg %p152
        %p339 = pneg %p149
        %p340 = pneg %p173
        %p341 = pneg %p170
        %p342 = pneg %p199
        %p343 = pneg %p196
        %s344 = sand.u32 %s186, 1
        %s345 = scalar_lea.sflag [#allocation4], %s344
        %s346 = sand.u32 %s186, 1
        %s347 = smul.addr %s346, 16
        %s348 = scalar_lea.vmem [#allocation10], %s347
        %v349 = vld [vmem:[%s302] sm:$0xff]
        %v350 = vld [vmem:[%s302 + $0x8] sm:$0xff]
        %v351 = vrot.slane %v349, 7
        %v352 = vrot.slane %v350, 7
        %v353 = vlaneseq
        %v354 = vshrl.u32 %v353, 7
        %vm355 = vcmp.lt.s32.totalorder %v354, 1
        %v356 = vsel %vm355, %v351, %v352
        %v357 = vsel %vm355, %v352, %v351
        %v358 = vadd.s32 %v354, 8
        %v359 = vadd.s32 %v354, 4294967295
        %v360 = vadd.s32 %v358, 4294967295
        %vm361 = vcmp.ge.s32.totalorder %v359, 0
        %vm362 = vcmp.ge.s32.totalorder %v360, 0
        %vm363 = vcmp.lt.s32.totalorder %v359, 16
        %vm364 = vcmp.lt.s32.totalorder %v360, 16
        %vm365 = vmand %vm361, %vm363
        %vm366 = vmand %vm362, %vm364
        %v367 = vsel %vm365, 1, 0
        %v368 = vsel %vm366, 1, 0
        %v369 = vcvt.s32.f32 %v367
        %v370 = vcvt.s32.f32 %v368
        %v371 = vmul.f32 %v357, %v369
        %v372 = vmul.f32 %v356, %v370
        %v373 = vpack.c.bf16 %v372, %v371
        %v374 = vld [vmem:[#allocation5] sm:$0xf]
        %v375 = vld [vmem:[#allocation5 + $0x4] sm:$0xf]
        %v376 = vld [vmem:[#allocation5 + $0x8] sm:$0xf]
        %v377 = vld [vmem:[#allocation5 + $0xc] sm:$0xf]
        %v378 = vld [vmem:[#allocation5 + $0x10] sm:$0xf]
        %v379 = vld [vmem:[#allocation5 + $0x14] sm:$0xf]
        %v380 = vld [vmem:[#allocation5 + $0x18] sm:$0xf]
        %v381 = vld [vmem:[#allocation5 + $0x1c] sm:$0xf]
        %v382 = vld [vmem:[#allocation5 + $0x20] sm:$0xf]
        %v383 = vld [vmem:[#allocation5 + $0x24] sm:$0xf]
        %v384 = vld [vmem:[#allocation5 + $0x28] sm:$0xf]
        %v385 = vld [vmem:[#allocation5 + $0x2c] sm:$0xf]
        %v386 = vld [vmem:[#allocation5 + $0x30] sm:$0xf]
        %v387 = vld [vmem:[#allocation5 + $0x34] sm:$0xf]
        %v388 = vld [vmem:[#allocation5 + $0x38] sm:$0xf]
        %v389 = vld [vmem:[#allocation5 + $0x3c] sm:$0xf]
        %v390 = vpack.c.bf16 %v350, %v349
        %s391 = scalar_lea.vmem [#allocation5], 64
        %v392 = vld [vmem:[%s391] sm:$0xf]
        %v393 = vld [vmem:[%s391 + $0x4] sm:$0xf]
        %v394 = vld [vmem:[%s391 + $0x8] sm:$0xf]
        %v395 = vld [vmem:[%s391 + $0xc] sm:$0xf]
        %v396 = vld [vmem:[%s391 + $0x10] sm:$0xf]
        %v397 = vld [vmem:[%s391 + $0x14] sm:$0xf]
        %v398 = vld [vmem:[%s391 + $0x18] sm:$0xf]
        %v399 = vld [vmem:[%s391 + $0x1c] sm:$0xf]
        %v400 = vld [vmem:[%s391 + $0x20] sm:$0xf]
        %v401 = vld [vmem:[%s391 + $0x24] sm:$0xf]
        %v402 = vld [vmem:[%s391 + $0x28] sm:$0xf]
        %v403 = vld [vmem:[%s391 + $0x2c] sm:$0xf]
        %v404 = vld [vmem:[%s391 + $0x30] sm:$0xf]
        %v405 = vld [vmem:[%s391 + $0x34] sm:$0xf]
        %v406 = vld [vmem:[%s391 + $0x38] sm:$0xf]
        %v407 = vld [vmem:[%s391 + $0x3c] sm:$0xf]
        %v424 = vunpack.c.l.b16 %v392
        %v425 = vunpack.c.l.b16 %v393
        %v426 = vunpack.c.l.b16 %v394
        %v427 = vunpack.c.l.b16 %v395
        %v428 = vunpack.c.l.b16 %v396
        %v429 = vunpack.c.l.b16 %v397
        %v430 = vunpack.c.l.b16 %v398
        %v431 = vunpack.c.l.b16 %v399
        %v432 = vunpack.c.l.b16 %v400
        %v433 = vunpack.c.l.b16 %v401
        %v434 = vunpack.c.l.b16 %v402
        %v435 = vunpack.c.l.b16 %v403
        %v436 = vunpack.c.l.b16 %v404
        %v437 = vunpack.c.l.b16 %v405
        %v438 = vunpack.c.l.b16 %v406
        %v439 = vunpack.c.l.b16 %v407
        %v440 = vpack.c.b16 %v425, %v424
        %v441 = vpack.c.b16 %v427, %v426
        %v442 = vpack.c.b16 %v429, %v428
        %v443 = vpack.c.b16 %v431, %v430
        %v444 = vpack.c.b16 %v433, %v432
        %v445 = vpack.c.b16 %v435, %v434
        %v446 = vpack.c.b16 %v437, %v436
        %v447 = vpack.c.b16 %v439, %v438
        %456 = vmatpush.bf16.msra.mxu0 %v447
        %457 = vmatpush.bf16.msra.mxu0 %v446
        %458 = vmatpush.bf16.msra.mxu0 %v445
        %459 = vmatpush.bf16.msra.mxu0 %v444
        %460 = vmatpush.bf16.msra.mxu0 %v443
        %461 = vmatpush.bf16.msra.mxu0 %v442
        %462 = vmatpush.bf16.msra.mxu0 %v441
        %463 = vmatpush.bf16.msra.mxu0 %v440
        %464 = vmatmul.bf16.gmra.mxu0 %v390
        %v465 = vpop.f32.mrf.mxu0
        %v466 = vadd.f32 0.0, %v465
        %v467 = vpop.f32.mrf.mxu0
        %v468 = vadd.f32 0.0, %v467
        %469 = vdwg.mxu0
        %v486 = vunpack.c.l.b16 %v374
        %v487 = vunpack.c.l.b16 %v375
        %v488 = vunpack.c.l.b16 %v376
        %v489 = vunpack.c.l.b16 %v377
        %v490 = vunpack.c.l.b16 %v378
        %v491 = vunpack.c.l.b16 %v379
        %v492 = vunpack.c.l.b16 %v380
        %v493 = vunpack.c.l.b16 %v381
        %v494 = vunpack.c.l.b16 %v382
        %v495 = vunpack.c.l.b16 %v383
        %v496 = vunpack.c.l.b16 %v384
        %v497 = vunpack.c.l.b16 %v385
        %v498 = vunpack.c.l.b16 %v386
        %v499 = vunpack.c.l.b16 %v387
        %v500 = vunpack.c.l.b16 %v388
        %v501 = vunpack.c.l.b16 %v389
        %v502 = vpack.c.b16 %v487, %v486
        %v503 = vpack.c.b16 %v489, %v488
        %v504 = vpack.c.b16 %v491, %v490
        %v505 = vpack.c.b16 %v493, %v492
        %v506 = vpack.c.b16 %v495, %v494
        %v507 = vpack.c.b16 %v497, %v496
        %v508 = vpack.c.b16 %v499, %v498
        %v509 = vpack.c.b16 %v501, %v500
        %518 = vmatpush.bf16.msra.mxu0 %v509
        %519 = vmatpush.bf16.msra.mxu0 %v508
        %520 = vmatpush.bf16.msra.mxu0 %v507
        %521 = vmatpush.bf16.msra.mxu0 %v506
        %522 = vmatpush.bf16.msra.mxu0 %v505
        %523 = vmatpush.bf16.msra.mxu0 %v504
        %524 = vmatpush.bf16.msra.mxu0 %v503
        %525 = vmatpush.bf16.msra.mxu0 %v502
        %526 = vmatmul.bf16.gmra.mxu0 %v373
        %v527 = vpop.f32.mrf.mxu0
        %v528 = vadd.f32 %v466, %v527
        %v529 = vpop.f32.mrf.mxu0
        %v530 = vadd.f32 %v468, %v529
        %531 = vdwg.mxu0
        %v532 = vrot.slane %v349, 1
        %v533 = vrot.slane %v350, 1
        %vm534 = vcmp.lt.s32.totalorder %v354, 7
        %v535 = vsel %vm534, %v532, %v533
        %v536 = vsel %vm534, %v533, %v532
        %v537 = vadd.s32 %v354, 1
        %v538 = vadd.s32 %v358, 1
        %vm539 = vcmp.ge.s32.totalorder %v537, 0
        %vm540 = vcmp.ge.s32.totalorder %v538, 0
        %vm541 = vcmp.lt.s32.totalorder %v537, 16
        %vm542 = vcmp.lt.s32.totalorder %v538, 16
        %vm543 = vmand %vm539, %vm541
        %vm544 = vmand %vm540, %vm542
        %v545 = vsel %vm543, 1, 0
        %v546 = vsel %vm544, 1, 0
        %v547 = vcvt.s32.f32 %v545
        %v548 = vcvt.s32.f32 %v546
        %v549 = vmul.f32 %v535, %v547
        %v550 = vmul.f32 %v536, %v548
        %v551 = vpack.c.bf16 %v550, %v549
        %s552 = scalar_lea.vmem [#allocation5], 128
        %v553 = vld [vmem:[%s552] sm:$0xf]
        %v554 = vld [vmem:[%s552 + $0x4] sm:$0xf]
        %v555 = vld [vmem:[%s552 + $0x8] sm:$0xf]
        %v556 = vld [vmem:[%s552 + $0xc] sm:$0xf]
        %v557 = vld [vmem:[%s552 + $0x10] sm:$0xf]
        %v558 = vld [vmem:[%s552 + $0x14] sm:$0xf]
        %v559 = vld [vmem:[%s552 + $0x18] sm:$0xf]
        %v560 = vld [vmem:[%s552 + $0x1c] sm:$0xf]
        %v561 = vld [vmem:[%s552 + $0x20] sm:$0xf]
        %v562 = vld [vmem:[%s552 + $0x24] sm:$0xf]
        %v563 = vld [vmem:[%s552 + $0x28] sm:$0xf]
        %v564 = vld [vmem:[%s552 + $0x2c] sm:$0xf]
        %v565 = vld [vmem:[%s552 + $0x30] sm:$0xf]
        %v566 = vld [vmem:[%s552 + $0x34] sm:$0xf]
        %v567 = vld [vmem:[%s552 + $0x38] sm:$0xf]
        %v568 = vld [vmem:[%s552 + $0x3c] sm:$0xf]
        %v585 = vunpack.c.l.b16 %v553
        %v586 = vunpack.c.l.b16 %v554
        %v587 = vunpack.c.l.b16 %v555
        %v588 = vunpack.c.l.b16 %v556
        %v589 = vunpack.c.l.b16 %v557
        %v590 = vunpack.c.l.b16 %v558
        %v591 = vunpack.c.l.b16 %v559
        %v592 = vunpack.c.l.b16 %v560
        %v593 = vunpack.c.l.b16 %v561
        %v594 = vunpack.c.l.b16 %v562
        %v595 = vunpack.c.l.b16 %v563
        %v596 = vunpack.c.l.b16 %v564
        %v597 = vunpack.c.l.b16 %v565
        %v598 = vunpack.c.l.b16 %v566
        %v599 = vunpack.c.l.b16 %v567
        %v600 = vunpack.c.l.b16 %v568
        %v601 = vpack.c.b16 %v586, %v585
        %v602 = vpack.c.b16 %v588, %v587
        %v603 = vpack.c.b16 %v590, %v589
        %v604 = vpack.c.b16 %v592, %v591
        %v605 = vpack.c.b16 %v594, %v593
        %v606 = vpack.c.b16 %v596, %v595
        %v607 = vpack.c.b16 %v598, %v597
        %v608 = vpack.c.b16 %v600, %v599
        %617 = vmatpush.bf16.msra.mxu0 %v608
        %618 = vmatpush.bf16.msra.mxu0 %v607
        %619 = vmatpush.bf16.msra.mxu0 %v606
        %620 = vmatpush.bf16.msra.mxu0 %v605
        %621 = vmatpush.bf16.msra.mxu0 %v604
        %622 = vmatpush.bf16.msra.mxu0 %v603
        %623 = vmatpush.bf16.msra.mxu0 %v602
        %624 = vmatpush.bf16.msra.mxu0 %v601
        %625 = vmatmul.bf16.gmra.mxu0 %v551
        %v626 = vpop.f32.mrf.mxu0
        %v627 = vadd.f32 0.0, %v626
        %v628 = vpop.f32.mrf.mxu0
        %v629 = vadd.f32 0.0, %v628
        %630 = vdwg.mxu0
        %v631 = vadd.f32 %v528, %v627
        %v632 = vadd.f32 %v530, %v629
        %v633 = vld [vmem:[%s2] sm:$0x1]
        %v635 = vperm.slane %v633, 0
        %v637 = vadd.f32 %v631, %v635
        %v638 = vadd.f32 %v632, %v635
        %v639 = vmax.f32 %v637, 0.0
        %v640 = vmax.f32 %v638, 0.0
        %v641 = vmin.f32 %v639, 6.0
        %v642 = vmin.f32 %v640, 6.0
        %v643 = vpack.c.bf16 %v642, %v641
        %v644 = vld [vmem:[#allocation7] sm:$0xf]
        %v645 = vld [vmem:[#allocation7 + $0x4] sm:$0xf]
        %v646 = vld [vmem:[#allocation7 + $0x8] sm:$0xf]
        %v647 = vld [vmem:[#allocation7 + $0xc] sm:$0xf]
        %v648 = vld [vmem:[#allocation7 + $0x10] sm:$0xf]
        %v649 = vld [vmem:[#allocation7 + $0x14] sm:$0xf]
        %v650 = vld [vmem:[#allocation7 + $0x18] sm:$0xf]
        %v651 = vld [vmem:[#allocation7 + $0x1c] sm:$0xf]
        %v652 = vld [vmem:[#allocation7 + $0x20] sm:$0xf]
        %v653 = vld [vmem:[#allocation7 + $0x24] sm:$0xf]
        %v654 = vld [vmem:[#allocation7 + $0x28] sm:$0xf]
        %v655 = vld [vmem:[#allocation7 + $0x2c] sm:$0xf]
        %v656 = vld [vmem:[#allocation7 + $0x30] sm:$0xf]
        %v657 = vld [vmem:[#allocation7 + $0x34] sm:$0xf]
        %v658 = vld [vmem:[#allocation7 + $0x38] sm:$0xf]
        %v659 = vld [vmem:[#allocation7 + $0x3c] sm:$0xf]
        %v660 = vld [vmem:[%s4] sm:$0x1]
        %v662 = vperm.slane %v660, 0
        %v680 = vunpack.c.l.b16 %v644
        %v681 = vunpack.c.l.b16 %v645
        %v682 = vunpack.c.l.b16 %v646
        %v683 = vunpack.c.l.b16 %v647
        %v684 = vunpack.c.l.b16 %v648
        %v685 = vunpack.c.l.b16 %v649
        %v686 = vunpack.c.l.b16 %v650
        %v687 = vunpack.c.l.b16 %v651
        %v688 = vunpack.c.l.b16 %v652
        %v689 = vunpack.c.l.b16 %v653
        %v690 = vunpack.c.l.b16 %v654
        %v691 = vunpack.c.l.b16 %v655
        %v692 = vunpack.c.l.b16 %v656
        %v693 = vunpack.c.l.b16 %v657
        %v694 = vunpack.c.l.b16 %v658
        %v695 = vunpack.c.l.b16 %v659
        %v696 = vpack.c.b16 %v681, %v680
        %v697 = vpack.c.b16 %v683, %v682
        %v698 = vpack.c.b16 %v685, %v684
        %v699 = vpack.c.b16 %v687, %v686
        %v700 = vpack.c.b16 %v689, %v688
        %v701 = vpack.c.b16 %v691, %v690
        %v702 = vpack.c.b16 %v693, %v692
        %v703 = vpack.c.b16 %v695, %v694
        %712 = vmatpush.bf16.msra.mxu0 %v703
        %713 = vmatpush.bf16.msra.mxu0 %v702
        %714 = vmatpush.bf16.msra.mxu0 %v701
        %715 = vmatpush.bf16.msra.mxu0 %v700
        %716 = vmatpush.bf16.msra.mxu0 %v699
        %717 = vmatpush.bf16.msra.mxu0 %v698
        %718 = vmatpush.bf16.msra.mxu0 %v697
        %719 = vmatpush.bf16.msra.mxu0 %v696
        %720 = vmatmul.bf16.gmra.mxu0 %v643
        %v721 = vpop.f32.mrf.mxu0
        %v722 = vadd.f32 %v662, %v721
        %v723 = vpop.f32.mrf.mxu0
        %v724 = vadd.f32 %v662, %v723
        %725 = vdwg.mxu0
        %v726 = vmax.f32 %v722, 0.0
        %v727 = vmax.f32 %v724, 0.0
        %v728 = vmin.f32 %v726, 6.0
        %v729 = vmin.f32 %v727, 6.0
        %v730 = vrot.slane %v728, 7
        %v731 = vrot.slane %v729, 7
        %v732 = vsel %vm355, %v730, %v731
        %v733 = vsel %vm355, %v731, %v730
        %v734 = vmul.f32 %v733, %v369
        %v735 = vmul.f32 %v732, %v370
        %v736 = vpack.c.bf16 %v735, %v734
        %v737 = vld [vmem:[#allocation8] sm:$0xf]
        %v738 = vld [vmem:[#allocation8 + $0x4] sm:$0xf]
        %v739 = vld [vmem:[#allocation8 + $0x8] sm:$0xf]
        %v740 = vld [vmem:[#allocation8 + $0xc] sm:$0xf]
        %v741 = vld [vmem:[#allocation8 + $0x10] sm:$0xf]
        %v742 = vld [vmem:[#allocation8 + $0x14] sm:$0xf]
        %v743 = vld [vmem:[#allocation8 + $0x18] sm:$0xf]
        %v744 = vld [vmem:[#allocation8 + $0x1c] sm:$0xf]
        %v745 = vld [vmem:[#allocation8 + $0x20] sm:$0xf]
        %v746 = vld [vmem:[#allocation8 + $0x24] sm:$0xf]
        %v747 = vld [vmem:[#allocation8 + $0x28] sm:$0xf]
        %v748 = vld [vmem:[#allocation8 + $0x2c] sm:$0xf]
        %v749 = vld [vmem:[#allocation8 + $0x30] sm:$0xf]
        %v750 = vld [vmem:[#allocation8 + $0x34] sm:$0xf]
        %v751 = vld [vmem:[#allocation8 + $0x38] sm:$0xf]
        %v752 = vld [vmem:[#allocation8 + $0x3c] sm:$0xf]
        %v753 = vpack.c.bf16 %v729, %v728
        %s754 = scalar_lea.vmem [#allocation8], 64
        %v755 = vld [vmem:[%s754] sm:$0xf]
        %v756 = vld [vmem:[%s754 + $0x4] sm:$0xf]
        %v757 = vld [vmem:[%s754 + $0x8] sm:$0xf]
        %v758 = vld [vmem:[%s754 + $0xc] sm:$0xf]
        %v759 = vld [vmem:[%s754 + $0x10] sm:$0xf]
        %v760 = vld [vmem:[%s754 + $0x14] sm:$0xf]
        %v761 = vld [vmem:[%s754 + $0x18] sm:$0xf]
        %v762 = vld [vmem:[%s754 + $0x1c] sm:$0xf]
        %v763 = vld [vmem:[%s754 + $0x20] sm:$0xf]
        %v764 = vld [vmem:[%s754 + $0x24] sm:$0xf]
        %v765 = vld [vmem:[%s754 + $0x28] sm:$0xf]
        %v766 = vld [vmem:[%s754 + $0x2c] sm:$0xf]
        %v767 = vld [vmem:[%s754 + $0x30] sm:$0xf]
        %v768 = vld [vmem:[%s754 + $0x34] sm:$0xf]
        %v769 = vld [vmem:[%s754 + $0x38] sm:$0xf]
        %v770 = vld [vmem:[%s754 + $0x3c] sm:$0xf]
        %v787 = vunpack.c.l.b16 %v755
        %v788 = vunpack.c.l.b16 %v756
        %v789 = vunpack.c.l.b16 %v757
        %v790 = vunpack.c.l.b16 %v758
        %v791 = vunpack.c.l.b16 %v759
        %v792 = vunpack.c.l.b16 %v760
        %v793 = vunpack.c.l.b16 %v761
        %v794 = vunpack.c.l.b16 %v762
        %v795 = vunpack.c.l.b16 %v763
        %v796 = vunpack.c.l.b16 %v764
        %v797 = vunpack.c.l.b16 %v765
        %v798 = vunpack.c.l.b16 %v766
        %v799 = vunpack.c.l.b16 %v767
        %v800 = vunpack.c.l.b16 %v768
        %v801 = vunpack.c.l.b16 %v769
        %v802 = vunpack.c.l.b16 %v770
        %v803 = vpack.c.b16 %v788, %v787
        %v804 = vpack.c.b16 %v790, %v789
        %v805 = vpack.c.b16 %v792, %v791
        %v806 = vpack.c.b16 %v794, %v793
        %v807 = vpack.c.b16 %v796, %v795
        %v808 = vpack.c.b16 %v798, %v797
        %v809 = vpack.c.b16 %v800, %v799
        %v810 = vpack.c.b16 %v802, %v801
        %819 = vmatpush.bf16.msra.mxu0 %v810
        %820 = vmatpush.bf16.msra.mxu0 %v809
        %821 = vmatpush.bf16.msra.mxu0 %v808
        %822 = vmatpush.bf16.msra.mxu0 %v807
        %823 = vmatpush.bf16.msra.mxu0 %v806
        %824 = vmatpush.bf16.msra.mxu0 %v805
        %825 = vmatpush.bf16.msra.mxu0 %v804
        %826 = vmatpush.bf16.msra.mxu0 %v803
        %827 = vmatmul.bf16.gmra.mxu0 %v753
        %v828 = vpop.f32.mrf.mxu0
        %v829 = vadd.f32 0.0, %v828
        %v830 = vpop.f32.mrf.mxu0
        %v831 = vadd.f32 0.0, %v830
        %832 = vdwg.mxu0
        %v849 = vunpack.c.l.b16 %v737
        %v850 = vunpack.c.l.b16 %v738
        %v851 = vunpack.c.l.b16 %v739
        %v852 = vunpack.c.l.b16 %v740
        %v853 = vunpack.c.l.b16 %v741
        %v854 = vunpack.c.l.b16 %v742
        %v855 = vunpack.c.l.b16 %v743
        %v856 = vunpack.c.l.b16 %v744
        %v857 = vunpack.c.l.b16 %v745
        %v858 = vunpack.c.l.b16 %v746
        %v859 = vunpack.c.l.b16 %v747
        %v860 = vunpack.c.l.b16 %v748
        %v861 = vunpack.c.l.b16 %v749
        %v862 = vunpack.c.l.b16 %v750
        %v863 = vunpack.c.l.b16 %v751
        %v864 = vunpack.c.l.b16 %v752
        %v865 = vpack.c.b16 %v850, %v849
        %v866 = vpack.c.b16 %v852, %v851
        %v867 = vpack.c.b16 %v854, %v853
        %v868 = vpack.c.b16 %v856, %v855
        %v869 = vpack.c.b16 %v858, %v857
        %v870 = vpack.c.b16 %v860, %v859
        %v871 = vpack.c.b16 %v862, %v861
        %v872 = vpack.c.b16 %v864, %v863
        %881 = vmatpush.bf16.msra.mxu0 %v872
        %882 = vmatpush.bf16.msra.mxu0 %v871
        %883 = vmatpush.bf16.msra.mxu0 %v870
        %884 = vmatpush.bf16.msra.mxu0 %v869
        %885 = vmatpush.bf16.msra.mxu0 %v868
        %886 = vmatpush.bf16.msra.mxu0 %v867
        %887 = vmatpush.bf16.msra.mxu0 %v866
        %888 = vmatpush.bf16.msra.mxu0 %v865
        %889 = vmatmul.bf16.gmra.mxu0 %v736
        %v890 = vpop.f32.mrf.mxu0
        %v891 = vadd.f32 %v829, %v890
        %v892 = vpop.f32.mrf.mxu0
        %v893 = vadd.f32 %v831, %v892
        %894 = vdwg.mxu0
        %v895 = vrot.slane %v728, 1
        %v896 = vrot.slane %v729, 1
        %v897 = vsel %vm534, %v895, %v896
        %v898 = vsel %vm534, %v896, %v895
        %v899 = vmul.f32 %v897, %v547
        %v900 = vmul.f32 %v898, %v548
        %v901 = vpack.c.bf16 %v900, %v899
        %s902 = scalar_lea.vmem [#allocation8], 128
        %v903 = vld [vmem:[%s902] sm:$0xf]
        %v904 = vld [vmem:[%s902 + $0x4] sm:$0xf]
        %v905 = vld [vmem:[%s902 + $0x8] sm:$0xf]
        %v906 = vld [vmem:[%s902 + $0xc] sm:$0xf]
        %v907 = vld [vmem:[%s902 + $0x10] sm:$0xf]
        %v908 = vld [vmem:[%s902 + $0x14] sm:$0xf]
        %v909 = vld [vmem:[%s902 + $0x18] sm:$0xf]
        %v910 = vld [vmem:[%s902 + $0x1c] sm:$0xf]
        %v911 = vld [vmem:[%s902 + $0x20] sm:$0xf]
        %v912 = vld [vmem:[%s902 + $0x24] sm:$0xf]
        %v913 = vld [vmem:[%s902 + $0x28] sm:$0xf]
        %v914 = vld [vmem:[%s902 + $0x2c] sm:$0xf]
        %v915 = vld [vmem:[%s902 + $0x30] sm:$0xf]
        %v916 = vld [vmem:[%s902 + $0x34] sm:$0xf]
        %v917 = vld [vmem:[%s902 + $0x38] sm:$0xf]
        %v918 = vld [vmem:[%s902 + $0x3c] sm:$0xf]
        %v935 = vunpack.c.l.b16 %v903
        %v936 = vunpack.c.l.b16 %v904
        %v937 = vunpack.c.l.b16 %v905
        %v938 = vunpack.c.l.b16 %v906
        %v939 = vunpack.c.l.b16 %v907
        %v940 = vunpack.c.l.b16 %v908
        %v941 = vunpack.c.l.b16 %v909
        %v942 = vunpack.c.l.b16 %v910
        %v943 = vunpack.c.l.b16 %v911
        %v944 = vunpack.c.l.b16 %v912
        %v945 = vunpack.c.l.b16 %v913
        %v946 = vunpack.c.l.b16 %v914
        %v947 = vunpack.c.l.b16 %v915
        %v948 = vunpack.c.l.b16 %v916
        %v949 = vunpack.c.l.b16 %v917
        %v950 = vunpack.c.l.b16 %v918
        %v951 = vpack.c.b16 %v936, %v935
        %v952 = vpack.c.b16 %v938, %v937
        %v953 = vpack.c.b16 %v940, %v939
        %v954 = vpack.c.b16 %v942, %v941
        %v955 = vpack.c.b16 %v944, %v943
        %v956 = vpack.c.b16 %v946, %v945
        %v957 = vpack.c.b16 %v948, %v947
        %v958 = vpack.c.b16 %v950, %v949
        %967 = vmatpush.bf16.msra.mxu0 %v958
        %968 = vmatpush.bf16.msra.mxu0 %v957
        %969 = vmatpush.bf16.msra.mxu0 %v956
        %970 = vmatpush.bf16.msra.mxu0 %v955
        %971 = vmatpush.bf16.msra.mxu0 %v954
        %972 = vmatpush.bf16.msra.mxu0 %v953
        %973 = vmatpush.bf16.msra.mxu0 %v952
        %974 = vmatpush.bf16.msra.mxu0 %v951
        %975 = vmatmul.bf16.gmra.mxu0 %v901
        %v976 = vpop.f32.mrf.mxu0
        %v977 = vadd.f32 0.0, %v976
        %v978 = vpop.f32.mrf.mxu0
        %v979 = vadd.f32 0.0, %v978
        %980 = vdwg.mxu0
        %v981 = vadd.f32 %v891, %v977
        %v982 = vadd.f32 %v893, %v979
        %v983 = vld [vmem:[%s6] sm:$0x1]
        %v985 = vperm.slane %v983, 0
        %v987 = vadd.f32 %v981, %v985
        %v988 = vadd.f32 %v982, %v985
        %v989 = vmax.f32 %v987, 0.0
        %v990 = vmax.f32 %v988, 0.0
        %v991 = vmin.f32 %v989, 6.0
        %v992 = vmin.f32 %v990, 6.0
        %v993 = vadd.f32 %v991, %v349
        %v994 = vadd.f32 %v992, %v350
        %995 = vst [vmem:[%s348] sm:$0xff] %v993
        %996 = vst [vmem:[%s348 + $0x8] sm:$0xff] %v994
        %s997 = sand.u32 %s186, 1
        %s998 = scalar_lea.sflag [#allocation4], %s997
        %s999 = sand.u32 %s186, 1
        %s1000 = smul.addr %s999, 16
        %s1001 = scalar_lea.vmem [#allocation10], %s1000
        // Predicated region
        $region65: #{tpu_custom_call.1} parent=47 // pred_check
          %p1002 = pneg %p196
        $region66: #{tpu_custom_call.1} parent=47 // pred_check_branch
          %1004 = sbr.rel (%p1002) target = $region68
        $region67: #{tpu_custom_call.1} parent=47 // pred_region
          %1006 = vsyncadd %s998, 0
          %s1007 = smul.addr %s26, 2
          %s1008 = smul.addr %s1007, 8
          %s1009 = scalar_lea.hbm %s7, %s1008
          %s1010 = sshll.u32 %s1001, 4
          %s1011 = int_to_ptr.vmem [resolvable:$true] %s1010
          %s1012 = sshll.u32 %s1009, 4
          %s1013 = int_to_ptr.hbm [resolvable:$true] %s1012
          %1018 = dma.vmem_to_hbm [thread:$0]  %s1011, 256, %s1013, %s998, 128, 128, 8
        $region68: #{tpu_custom_call.1} parent=47 // pred_fallthru
          _
      $region48: #{tpu_custom_call.1} parent=5 // pred_fallthru
        _
      %p1019 = scmp.le.s32.totalorder 2, %s21
      // Predicated region
      $region69: #{tpu_custom_call.1} parent=5 // pred_check
        %p1020 = pneg %p1019
      $region70: #{tpu_custom_call.1} parent=5 // pred_check_branch
        %1022 = sbr.rel (%p1020) target = $region72
      $region71: #{tpu_custom_call.1} parent=5 // pred_region
        %s1023 = ssub.s32 %s21, 2
        // Predicated region
        $region73: #{tpu_custom_call.1} parent=71 // pred_check
          %p1024 = pneg %p202
        $region74: #{tpu_custom_call.1} parent=71 // pred_check_branch
          %1026 = sbr.rel (%p1024) target = $region76
        $region75: #{tpu_custom_call.1} parent=71 // pred_region
          %s1027 = sand.u32 %s187, 1
          %s1028 = scalar_lea.sflag [#allocation4], %s1027
          %s1029 = sand.u32 %s187, 1
          %s1030 = smul.addr %s1029, 16
          %s1031 = scalar_lea.vmem [#allocation10], %s1030
          %1033 = dma.done %s1028, 256
        $region76: #{tpu_custom_call.1} parent=71 // pred_fallthru
          _
      $region72: #{tpu_custom_call.1} parent=5 // pred_fallthru
        _
    $region6: #{tpu_custom_call.1} parent=1 // loop_footer
      %s25 = sadd.s32 1, %s21
    $region7: #{tpu_custom_call.1} parent=1 // loop_footer_branch
      %20 = sbr.rel target = $region3
    $region8: #{tpu_custom_call.1} parent=1 // loop_exit
      _
    %1034 = vsyncpa [#allocation3], 1
    %s1035 = scalar_lea.sflag [#allocation3], 1
    %1036 = vsyncpa %s1035, 1
    %1037 = vsyncpa [#allocation6], 1
    %1038 = vsyncpa [#allocation9], 1
    %1039 = vsyncpa [#allocation4], 1
    %s1040 = scalar_lea.sflag [#allocation4], 1
    %1041 = vsyncpa %s1040, 1

// kernel: tpu_custom_call.1
$region0: #{tpu_custom_call.1}
  #allocation0 [shape = 'u32[]', space=smem, size = 0x4, offset = 0x4, fixed_abs, tag = 'smem constant byte address 0x4 - core index']
  #allocation1 [shape = 'u32[72,128]{1,0:T(1,128)}', space=vmem, size = 0x9000, scoped, tag = 'internal scratch']
  %s0 = inlined_call_operand.hbm [shape: f32[2,16,128], index: 0, kind: input, shape index: {}]
  %s1 = inlined_call_operand.hbm [shape: bf16[3,128,128], index: 1, kind: input, shape index: {}]
  %s2 = inlined_call_operand.vmem [shape: f32[1,128], index: 2, kind: input, shape index: {}]
  %s3 = inlined_call_operand.hbm [shape: bf16[128,128], index: 3, kind: input, shape index: {}]
  %s4 = inlined_call_operand.vmem [shape: f32[1,128], index: 4, kind: input, shape index: {}]
  %s5 = inlined_call_operand.hbm [shape: bf16[3,128,128], index: 5, kind: input, shape index: {}]
  %s6 = inlined_call_operand.vmem [shape: f32[1,128], index: 6, kind: input, shape index: {}]
  %s7 = inlined_call_operand.hbm [shape: f32[2,16,128], index: 7, kind: output, shape index: {}]
  %s8 = sld [smem:[#allocation0]]
  $region77: #{tpu_custom_call.1} parent=0
    _
  %s10 = ssub.s32 1, %s8
  %s11 = scalar_select 0, %s10, %s8
  $region1: #{tpu_custom_call.1} parent=0
    #allocation2 [shape = 'u8[16384]{0}', space=vmem, size = 0x4000, scoped, tag = 'input window, operand 0']
    #allocation3 [shape = 's32[2]{0}', space=sflag, size = 0x8, scoped, tag = 'scoped memory for tpu_custom_call.1']
    #allocation4 [shape = 's32[2]{0}', space=sflag, size = 0x8, scoped, tag = 'scoped memory for tpu_custom_call.1']
    #allocation5 [shape = 'u8[98304]{0}', space=vmem, size = 0x18000, scoped, tag = 'input window, operand 1, single buffered']
    #allocation6 [shape = 's32[1]{0}', space=sflag, size = 0x4, scoped, tag = 'scoped memory for tpu_custom_call.1']
    #allocation7 [shape = 'u8[32768]{0}', space=vmem, size = 0x8000, scoped, tag = 'input window, operand 3, single buffered']
    #allocation8 [shape = 'u8[98304]{0}', space=vmem, size = 0x18000, scoped, tag = 'input window, operand 5, single buffered']
    #allocation9 [shape = 's32[1]{0}', space=sflag, size = 0x4, scoped, tag = 'scoped memory for tpu_custom_call.1']
    #allocation10 [shape = 'u8[16384]{0}', space=vmem, size = 0x4000, scoped, tag = 'output window, operand 0']
    %12 = vsyncpa [#allocation3], 0
    %s13 = scalar_lea.sflag [#allocation3], 1
    %14 = vsyncpa %s13, 0
    %15 = vsyncpa [#allocation6], 0
    %16 = vsyncpa [#allocation9], 0
    %17 = vsyncpa [#allocation4], 0
    %s18 = scalar_lea.sflag [#allocation4], 1
    %19 = vsyncpa %s18, 0
    loop: start=0, step=1, limit=4
    $region2: #{tpu_custom_call.1} parent=1 // loop_pre_header
      _
    $region3: #{tpu_custom_call.1} parent=1 // loop_header
      %s21 = sphi 0, %s25
      %p22 = scmp.ge.s32.totalorder %s21, 4
      %s31 = sphi 0, %s33
      %s34 = sphi 0, %s31
      %s35 = sphi 0, %s34
      %s51 = sphi 0, %s35
      %s55 = sphi 0, %s55
      %s57 = sphi 0, %s55
      %s58 = sphi 0, %s57
      %s72 = sphi 0, %s58
      %s76 = sphi 0, %s76
      %s78 = sphi 0, %s76
      %s79 = sphi 0, %s78
      %s93 = sphi 0, %s79
      %s97 = sphi 0, %s97
      %s99 = sphi 0, %s97
      %s100 = sphi 0, %s99
      %s114 = sphi 0, %s100
      %s118 = sphi 0, %s118
      %s120 = sphi 0, %s118
      %s121 = sphi 0, %s120
      %s135 = sphi 0, %s121
      %s139 = sphi 0, %s139
      %s141 = sphi 0, %s139
      %s142 = sphi 0, %s141
      %s156 = sphi 0, %s142
      %s160 = sphi 0, %s160
      %s162 = sphi 0, %s160
      %s163 = sphi 0, %s162
      %s177 = sphi 0, %s163
      %s183 = sphi 0, %s185
      %s186 = sphi 0, %s183
      %s187 = sphi 0, %s186
      %s203 = sphi 0, %s187
    $region4: #{tpu_custom_call.1} parent=1 // loop_header_branch
      %24 = sbr.rel (%p22) target = $region8
    $region5: #{tpu_custom_call.1} parent=1 // loop_body
      %s26 = ssub.s32 %s21, 1
      %s27 = ssub.s32 %s21, 2
      %s28 = sadd.s32 %s21, 1
      %s29 = ssub.s32 %s21, %s28
      %p30 = scmp.eq.s32.totalorder %s29, 0
      %s32 = sadd.s32 %s31, 1
      %s33 = scalar_select %p30, %s31, %s32
      %p36 = pneg %p30
      %p37 = scmp.eq.s32.totalorder %s21, 1
      %p38 = por %p36, %p37
      %p39 = scmp.ne.s32.totalorder %s31, %s34
      %p40 = scmp.eq.s32.totalorder %s21, 0
      %p41 = por %p39, %p40
      %p42 = scmp.ne.s32.totalorder %s31, %s34
      %p43 = scmp.eq.s32.totalorder %s26, 1
      %p44 = por %p42, %p43
      %p45 = scmp.ne.s32.totalorder %s34, %s35
      %p46 = scmp.eq.s32.totalorder %s26, 0
      %p47 = por %p45, %p46
      %p48 = scmp.ne.s32.totalorder %s34, %s35
      %p49 = scmp.eq.s32.totalorder %s27, 1
      %p50 = por %p48, %p49
      %p52 = scmp.ne.s32.totalorder %s35, %s51
      %p53 = scmp.eq.s32.totalorder %s27, 0
      %p54 = por %p52, %p53
      %s56 = sadd.s32 %s55, 1
      %p59 = scmp.eq.s32.totalorder %s21, 1
      %p60 = scmp.ne.s32.totalorder %s55, %s57
      %p61 = scmp.eq.s32.totalorder %s21, 0
      %p62 = por %p60, %p61
      %p63 = scmp.ne.s32.totalorder %s55, %s57
      %p64 = scmp.eq.s32.totalorder %s26, 1
      %p65 = por %p63, %p64
      %p66 = scmp.ne.s32.totalorder %s57, %s58
      %p67 = scmp.eq.s32.totalorder %s26, 0
      %p68 = por %p66, %p67
      %p69 = scmp.ne.s32.totalorder %s57, %s58
      %p70 = scmp.eq.s32.totalorder %s27, 1
      %p71 = por %p69, %p70
      %p73 = scmp.ne.s32.totalorder %s58, %s72
      %p74 = scmp.eq.s32.totalorder %s27, 0
      %p75 = por %p73, %p74
      %s77 = sadd.s32 %s76, 1
      %p80 = scmp.eq.s32.totalorder %s21, 1
      %p81 = scmp.ne.s32.totalorder %s76, %s78
      %p82 = scmp.eq.s32.totalorder %s21, 0
      %p83 = por %p81, %p82
      %p84 = scmp.ne.s32.totalorder %s76, %s78
      %p85 = scmp.eq.s32.totalorder %s26, 1
      %p86 = por %p84, %p85
      %p87 = scmp.ne.s32.totalorder %s78, %s79
      %p88 = scmp.eq.s32.totalorder %s26, 0
      %p89 = por %p87, %p88
      %p90 = scmp.ne.s32.totalorder %s78, %s79
      %p91 = scmp.eq.s32.totalorder %s27, 1
      %p92 = por %p90, %p91
      %p94 = scmp.ne.s32.totalorder %s79, %s93
      %p95 = scmp.eq.s32.totalorder %s27, 0
      %p96 = por %p94, %p95
      %s98 = sadd.s32 %s97, 1
      %p101 = scmp.eq.s32.totalorder %s21, 1
      %p102 = scmp.ne.s32.totalorder %s97, %s99
      %p103 = scmp.eq.s32.totalorder %s21, 0
      %p104 = por %p102, %p103
      %p105 = scmp.ne.s32.totalorder %s97, %s99
      %p106 = scmp.eq.s32.totalorder %s26, 1
      %p107 = por %p105, %p106
      %p108 = scmp.ne.s32.totalorder %s99, %s100
      %p109 = scmp.eq.s32.totalorder %s26, 0
      %p110 = por %p108, %p109
      %p111 = scmp.ne.s32.totalorder %s99, %s100
      %p112 = scmp.eq.s32.totalorder %s27, 1
      %p113 = por %p111, %p112
      %p115 = scmp.ne.s32.totalorder %s100, %s114
      %p116 = scmp.eq.s32.totalorder %s27, 0
      %p117 = por %p115, %p116
      %s119 = sadd.s32 %s118, 1
      %p122 = scmp.eq.s32.totalorder %s21, 1
      %p123 = scmp.ne.s32.totalorder %s118, %s120
      %p124 = scmp.eq.s32.totalorder %s21, 0
      %p125 = por %p123, %p124
      %p126 = scmp.ne.s32.totalorder %s118, %s120
      %p127 = scmp.eq.s32.totalorder %s26, 1
      %p128 = por %p126, %p127
      %p129 = scmp.ne.s32.totalorder %s120, %s121
      %p130 = scmp.eq.s32.totalorder %s26, 0
      %p131 = por %p129, %p130
      %p132 = scmp.ne.s32.totalorder %s120, %s121
      %p133 = scmp.eq.s32.totalorder %s27, 1
      %p134 = por %p132, %p133
      %p136 = scmp.ne.s32.totalorder %s121, %s135
      %p137 = scmp.eq.s32.totalorder %s27, 0
      %p138 = por %p136, %p137
      %s140 = sadd.s32 %s139, 1
      %p143 = scmp.eq.s32.totalorder %s21, 1
      %p144 = scmp.ne.s32.totalorder %s139, %s141
      %p145 = scmp.eq.s32.totalorder %s21, 0
      %p146 = por %p144, %p145
      %p147 = scmp.ne.s32.totalorder %s139, %s141
      %p148 = scmp.eq.s32.totalorder %s26, 1
      %p149 = por %p147, %p148
      %p150 = scmp.ne.s32.totalorder %s141, %s142
      %p151 = scmp.eq.s32.totalorder %s26, 0
      %p152 = por %p150, %p151
      %p153 = scmp.ne.s32.totalorder %s141, %s142
      %p154 = scmp.eq.s32.totalorder %s27, 1
      %p155 = por %p153, %p154
      %p157 = scmp.ne.s32.totalorder %s142, %s156
      %p158 = scmp.eq.s32.totalorder %s27, 0
      %p159 = por %p157, %p158
      %s161 = sadd.s32 %s160, 1
      %p164 = scmp.eq.s32.totalorder %s21, 1
      %p165 = scmp.ne.s32.totalorder %s160, %s162
      %p166 = scmp.eq.s32.totalorder %s21, 0
      %p167 = por %p165, %p166
      %p168 = scmp.ne.s32.totalorder %s160, %s162
      %p169 = scmp.eq.s32.totalorder %s26, 1
      %p170 = por %p168, %p169
      %p171 = scmp.ne.s32.totalorder %s162, %s163
      %p172 = scmp.eq.s32.totalorder %s26, 0
      %p173 = por %p171, %p172
      %p174 = scmp.ne.s32.totalorder %s162, %s163
      %p175 = scmp.eq.s32.totalorder %s27, 1
      %p176 = por %p174, %p175
      %p178 = scmp.ne.s32.totalorder %s163, %s177
      %p179 = scmp.eq.s32.totalorder %s27, 0
      %p180 = por %p178, %p179
      %s181 = ssub.s32 %s21, %s28
      %p182 = scmp.eq.s32.totalorder %s181, 0
      %s184 = sadd.s32 %s183, 1
      %s185 = scalar_select %p182, %s183, %s184
      %p188 = pneg %p182
      %p189 = scmp.eq.s32.totalorder %s21, 1
      %p190 = por %p188, %p189
      %p191 = scmp.ne.s32.totalorder %s183, %s186
      %p192 = scmp.eq.s32.totalorder %s21, 0
      %p193 = por %p191, %p192
      %p194 = scmp.ne.s32.totalorder %s183, %s186
      %p195 = scmp.eq.s32.totalorder %s26, 1
      %p196 = por %p194, %p195
      %p197 = scmp.ne.s32.totalorder %s186, %s187
      %p198 = scmp.eq.s32.totalorder %s26, 0
      %p199 = por %p197, %p198
      %p200 = scmp.ne.s32.totalorder %s186, %s187
      %p201 = scmp.eq.s32.totalorder %s27, 1
      %p202 = por %p200, %p201
      %p204 = scmp.ne.s32.totalorder %s187, %s203
      %p205 = scmp.eq.s32.totalorder %s27, 0
      %p206 = por %p204, %p205
      %p207 = scmp.le.s32.totalorder 1, %s21
      %p208 = scmp.lt.s32.totalorder %s21, 3
      %p209 = pnand %p207, %p208
      %p210 = pneg %p209
      // Predicated region
      $region9: #{tpu_custom_call.1} parent=5 // pred_check
        _
      $region10: #{tpu_custom_call.1} parent=5 // pred_check_branch
        %212 = sbr.rel (%p209) target = $region12
      $region11: #{tpu_custom_call.1} parent=5 // pred_region
        %s213 = ssub.s32 %s21, 1
        // Predicated region
        $region13: #{tpu_custom_call.1} parent=11 // pred_check
          %p214 = pneg %p68
        $region14: #{tpu_custom_call.1} parent=11 // pred_check_branch
          %216 = sbr.rel (%p214) target = $region16
        $region15: #{tpu_custom_call.1} parent=11 // pred_region
          %218 = vsyncadd [#allocation6], 0
          %s219 = sshll.u32 %s1, 4
          %s220 = int_to_ptr.hbm [resolvable:$true] %s219
          %s221 = sshll.u32 [#allocation5], 4
          %s222 = int_to_ptr.vmem [resolvable:$true] %s221
          %227 = dma.hbm_to_vmem [thread:$0]  %s220, 3072, %s222, [#allocation6], 64, 64, 4
        $region16: #{tpu_custom_call.1} parent=11 // pred_fallthru
          _
        // Predicated region
        $region17: #{tpu_custom_call.1} parent=11 // pred_check
          %p228 = pneg %p89
        $region18: #{tpu_custom_call.1} parent=11 // pred_check_branch
          %230 = sbr.rel (%p228) target = $region20
        $region19: #{tpu_custom_call.1} parent=11 // pred_region
          _
        $region20: #{tpu_custom_call.1} parent=11 // pred_fallthru
          _
        // Predicated region
        $region21: #{tpu_custom_call.1} parent=11 // pred_check
          %p231 = pneg %p110
        $region22: #{tpu_custom_call.1} parent=11 // pred_check_branch
          %233 = sbr.rel (%p231) target = $region24
        $region23: #{tpu_custom_call.1} parent=11 // pred_region
          %235 = vsyncadd [#allocation6], 0
          %s236 = sshll.u32 %s3, 4
          %s237 = int_to_ptr.hbm [resolvable:$true] %s236
          %s238 = sshll.u32 [#allocation7], 4
          %s239 = int_to_ptr.vmem [resolvable:$true] %s238
          %244 = dma.hbm_to_vmem [thread:$0]  %s237, 1024, %s239, [#allocation6], 64, 64, 4
        $region24: #{tpu_custom_call.1} parent=11 // pred_fallthru
          _
        // Predicated region
        $region25: #{tpu_custom_call.1} parent=11 // pred_check
          %p245 = pneg %p131
        $region26: #{tpu_custom_call.1} parent=11 // pred_check_branch
          %247 = sbr.rel (%p245) target = $region28
        $region27: #{tpu_custom_call.1} parent=11 // pred_region
          _
        $region28: #{tpu_custom_call.1} parent=11 // pred_fallthru
          _
        // Predicated region
        $region29: #{tpu_custom_call.1} parent=11 // pred_check
          %p248 = pneg %p152
        $region30: #{tpu_custom_call.1} parent=11 // pred_check_branch
          %250 = sbr.rel (%p248) target = $region32
        $region31: #{tpu_custom_call.1} parent=11 // pred_region
          %252 = vsyncadd [#allocation9], 0
          %s253 = sshll.u32 %s5, 4
          %s254 = int_to_ptr.hbm [resolvable:$true] %s253
          %s255 = sshll.u32 [#allocation8], 4
          %s256 = int_to_ptr.vmem [resolvable:$true] %s255
          %261 = dma.hbm_to_vmem [thread:$0]  %s254, 3072, %s256, [#allocation9], 64, 64, 4
        $region32: #{tpu_custom_call.1} parent=11 // pred_fallthru
          _
        // Predicated region
        $region33: #{tpu_custom_call.1} parent=11 // pred_check
          %p262 = pneg %p173
        $region34: #{tpu_custom_call.1} parent=11 // pred_check_branch
          %264 = sbr.rel (%p262) target = $region36
        $region35: #{tpu_custom_call.1} parent=11 // pred_region
          _
        $region36: #{tpu_custom_call.1} parent=11 // pred_fallthru
          _
      $region12: #{tpu_custom_call.1} parent=5 // pred_fallthru
        _
      %p265 = scmp.lt.s32.totalorder %s21, 2
      // Predicated region
      $region37: #{tpu_custom_call.1} parent=5 // pred_check
        %p266 = pneg %p265
      $region38: #{tpu_custom_call.1} parent=5 // pred_check_branch
        %268 = sbr.rel (%p266) target = $region40
      $region39: #{tpu_custom_call.1} parent=5 // pred_region
        // Predicated region
        $region41: #{tpu_custom_call.1} parent=39 // pred_check
          %p269 = pneg %p41
        $region42: #{tpu_custom_call.1} parent=39 // pred_check_branch
          %271 = sbr.rel (%p269) target = $region44
        $region43: #{tpu_custom_call.1} parent=39 // pred_region
          %s272 = sand.u32 %s31, 1
          %s273 = scalar_lea.sflag [#allocation3], %s272
          %s274 = sand.u32 %s31, 1
          %s275 = smul.addr %s274, 16
          %s276 = scalar_lea.vmem [#allocation2], %s275
          %278 = vsyncadd %s273, 0
          %s279 = smul.addr %s21, 2
          %s280 = smul.addr %s279, 8
          %s281 = scalar_lea.hbm %s0, %s280
          %s282 = sshll.u32 %s281, 4
          %s283 = int_to_ptr.hbm [resolvable:$true] %s282
          %s284 = sshll.u32 %s276, 4
          %s285 = int_to_ptr.vmem [resolvable:$true] %s284
          %290 = dma.hbm_to_vmem [thread:$0]  %s283, 256, %s285, %s273, 128, 128, 8
        $region44: #{tpu_custom_call.1} parent=39 // pred_fallthru
          _
      $region40: #{tpu_custom_call.1} parent=5 // pred_fallthru
        _
      %p291 = scmp.le.s32.totalorder 1, %s21
      %p292 = scmp.lt.s32.totalorder %s21, 3
      %p293 = pnand %p291, %p292
      %p294 = pneg %p293
      // Predicated region
      $region45: #{tpu_custom_call.1} parent=5 // pred_check
        _
      $region46: #{tpu_custom_call.1} parent=5 // pred_check_branch
        %296 = sbr.rel (%p293) target = $region48
      $region47: #{tpu_custom_call.1} parent=5 // pred_region
        %s297 = ssub.s32 %s21, 1
        %s298 = sand.u32 %s34, 1
        %s299 = scalar_lea.sflag [#allocation3], %s298
        %s300 = sand.u32 %s34, 1
        %s301 = smul.addr %s300, 16
        %s302 = scalar_lea.vmem [#allocation2], %s301
        // Predicated region
        $region49: #{tpu_custom_call.1} parent=47 // pred_check
          %p303 = pneg %p47
        $region50: #{tpu_custom_call.1} parent=47 // pred_check_branch
          %305 = sbr.rel (%p303) target = $region52
        $region51: #{tpu_custom_call.1} parent=47 // pred_region
          %307 = dma.done %s299, 256
        $region52: #{tpu_custom_call.1} parent=47 // pred_fallthru
          _
        // Predicated region
        $region53: #{tpu_custom_call.1} parent=47 // pred_check
          %p308 = pneg %p68
        $region54: #{tpu_custom_call.1} parent=47 // pred_check_branch
          %310 = sbr.rel (%p308) target = $region56
        $region55: #{tpu_custom_call.1} parent=47 // pred_region
          %312 = dma.done [#allocation6], 3072
        $region56: #{tpu_custom_call.1} parent=47 // pred_fallthru
          _
        // Predicated region
        $region57: #{tpu_custom_call.1} parent=47 // pred_check
          %p313 = pneg %p110
        $region58: #{tpu_custom_call.1} parent=47 // pred_check_branch
          %315 = sbr.rel (%p313) target = $region60
        $region59: #{tpu_custom_call.1} parent=47 // pred_region
          %317 = dma.done [#allocation6], 1024
        $region60: #{tpu_custom_call.1} parent=47 // pred_fallthru
          _
        // Predicated region
        $region61: #{tpu_custom_call.1} parent=47 // pred_check
          %p318 = pneg %p152
        $region62: #{tpu_custom_call.1} parent=47 // pred_check_branch
          %320 = sbr.rel (%p318) target = $region64
        $region63: #{tpu_custom_call.1} parent=47 // pred_region
          %322 = dma.done [#allocation9], 3072
        $region64: #{tpu_custom_call.1} parent=47 // pred_fallthru
          _
        %s323 = sand.u32 %s34, 1
        %s324 = scalar_lea.sflag [#allocation3], %s323
        %s325 = sand.u32 %s34, 1
        %s326 = smul.addr %s325, 16
        %s327 = scalar_lea.vmem [#allocation2], %s326
        %p328 = pneg %p47
        %p329 = pneg %p44
        %p330 = pneg %p68
        %p331 = pneg %p65
        %p332 = pneg %p89
        %p333 = pneg %p86
        %p334 = pneg %p110
        %p335 = pneg %p107
        %p336 = pneg %p131
        %p337 = pneg %p128
        %p338 = pneg %p152
        %p339 = pneg %p149
        %p340 = pneg %p173
        %p341 = pneg %p170
        %p342 = pneg %p199
        %p343 = pneg %p196
        %s344 = sand.u32 %s186, 1
        %s345 = scalar_lea.sflag [#allocation4], %s344
        %s346 = sand.u32 %s186, 1
        %s347 = smul.addr %s346, 16
        %s348 = scalar_lea.vmem [#allocation10], %s347
        %v349 = vld [vmem:[%s302] sm:$0xff]
        %v350 = vld [vmem:[%s302 + $0x8] sm:$0xff]
        %v351 = vrot.slane %v349, 7
        %v352 = vrot.slane %v350, 7
        %v353 = vlaneseq
        %v354 = vshrl.u32 %v353, 7
        %vm355 = vcmp.lt.s32.totalorder %v354, 1
        %v356 = vsel %vm355, %v351, %v352
        %v357 = vsel %vm355, %v352, %v351
        %v358 = vadd.s32 %v354, 8
        %v359 = vadd.s32 %v354, 4294967295
        %v360 = vadd.s32 %v358, 4294967295
        %vm361 = vcmp.ge.s32.totalorder %v359, 0
        %vm362 = vcmp.ge.s32.totalorder %v360, 0
        %vm363 = vcmp.lt.s32.totalorder %v359, 16
        %vm364 = vcmp.lt.s32.totalorder %v360, 16
        %vm365 = vmand %vm361, %vm363
        %vm366 = vmand %vm362, %vm364
        %v367 = vsel %vm365, 1, 0
        %v368 = vsel %vm366, 1, 0
        %v369 = vcvt.s32.f32 %v367
        %v370 = vcvt.s32.f32 %v368
        %v371 = vmul.f32 %v357, %v369
        %v372 = vmul.f32 %v356, %v370
        %v373 = vpack.c.bf16 %v372, %v371
        %v374 = vld [vmem:[#allocation5] sm:$0xf]
        %v375 = vld [vmem:[#allocation5 + $0x4] sm:$0xf]
        %v376 = vld [vmem:[#allocation5 + $0x8] sm:$0xf]
        %v377 = vld [vmem:[#allocation5 + $0xc] sm:$0xf]
        %v378 = vld [vmem:[#allocation5 + $0x10] sm:$0xf]
        %v379 = vld [vmem:[#allocation5 + $0x14] sm:$0xf]
        %v380 = vld [vmem:[#allocation5 + $0x18] sm:$0xf]
        %v381 = vld [vmem:[#allocation5 + $0x1c] sm:$0xf]
        %v382 = vld [vmem:[#allocation5 + $0x20] sm:$0xf]
        %v383 = vld [vmem:[#allocation5 + $0x24] sm:$0xf]
        %v384 = vld [vmem:[#allocation5 + $0x28] sm:$0xf]
        %v385 = vld [vmem:[#allocation5 + $0x2c] sm:$0xf]
        %v386 = vld [vmem:[#allocation5 + $0x30] sm:$0xf]
        %v387 = vld [vmem:[#allocation5 + $0x34] sm:$0xf]
        %v388 = vld [vmem:[#allocation5 + $0x38] sm:$0xf]
        %v389 = vld [vmem:[#allocation5 + $0x3c] sm:$0xf]
        %v390 = vpack.c.bf16 %v350, %v349
        %s391 = scalar_lea.vmem [#allocation5], 64
        %v392 = vld [vmem:[%s391] sm:$0xf]
        %v393 = vld [vmem:[%s391 + $0x4] sm:$0xf]
        %v394 = vld [vmem:[%s391 + $0x8] sm:$0xf]
        %v395 = vld [vmem:[%s391 + $0xc] sm:$0xf]
        %v396 = vld [vmem:[%s391 + $0x10] sm:$0xf]
        %v397 = vld [vmem:[%s391 + $0x14] sm:$0xf]
        %v398 = vld [vmem:[%s391 + $0x18] sm:$0xf]
        %v399 = vld [vmem:[%s391 + $0x1c] sm:$0xf]
        %v400 = vld [vmem:[%s391 + $0x20] sm:$0xf]
        %v401 = vld [vmem:[%s391 + $0x24] sm:$0xf]
        %v402 = vld [vmem:[%s391 + $0x28] sm:$0xf]
        %v403 = vld [vmem:[%s391 + $0x2c] sm:$0xf]
        %v404 = vld [vmem:[%s391 + $0x30] sm:$0xf]
        %v405 = vld [vmem:[%s391 + $0x34] sm:$0xf]
        %v406 = vld [vmem:[%s391 + $0x38] sm:$0xf]
        %v407 = vld [vmem:[%s391 + $0x3c] sm:$0xf]
        %v424 = vunpack.c.l.b16 %v392
        %v425 = vunpack.c.l.b16 %v393
        %v426 = vunpack.c.l.b16 %v394
        %v427 = vunpack.c.l.b16 %v395
        %v428 = vunpack.c.l.b16 %v396
        %v429 = vunpack.c.l.b16 %v397
        %v430 = vunpack.c.l.b16 %v398
        %v431 = vunpack.c.l.b16 %v399
        %v432 = vunpack.c.l.b16 %v400
        %v433 = vunpack.c.l.b16 %v401
        %v434 = vunpack.c.l.b16 %v402
        %v435 = vunpack.c.l.b16 %v403
        %v436 = vunpack.c.l.b16 %v404
        %v437 = vunpack.c.l.b16 %v405
        %v438 = vunpack.c.l.b16 %v406
        %v439 = vunpack.c.l.b16 %v407
        %v440 = vpack.c.b16 %v425, %v424
        %v441 = vpack.c.b16 %v427, %v426
        %v442 = vpack.c.b16 %v429, %v428
        %v443 = vpack.c.b16 %v431, %v430
        %v444 = vpack.c.b16 %v433, %v432
        %v445 = vpack.c.b16 %v435, %v434
        %v446 = vpack.c.b16 %v437, %v436
        %v447 = vpack.c.b16 %v439, %v438
        %456 = vmatpush.bf16.msra.mxu0 %v447
        %457 = vmatpush.bf16.msra.mxu0 %v446
        %458 = vmatpush.bf16.msra.mxu0 %v445
        %459 = vmatpush.bf16.msra.mxu0 %v444
        %460 = vmatpush.bf16.msra.mxu0 %v443
        %461 = vmatpush.bf16.msra.mxu0 %v442
        %462 = vmatpush.bf16.msra.mxu0 %v441
        %463 = vmatpush.bf16.msra.mxu0 %v440
        %464 = vmatmul.bf16.gmra.mxu0 %v390
        %v465 = vpop.f32.mrf.mxu0
        %v466 = vadd.f32 0.0, %v465
        %v467 = vpop.f32.mrf.mxu0
        %v468 = vadd.f32 0.0, %v467
        %469 = vdwg.mxu0
        %v486 = vunpack.c.l.b16 %v374
        %v487 = vunpack.c.l.b16 %v375
        %v488 = vunpack.c.l.b16 %v376
        %v489 = vunpack.c.l.b16 %v377
        %v490 = vunpack.c.l.b16 %v378
        %v491 = vunpack.c.l.b16 %v379
        %v492 = vunpack.c.l.b16 %v380
        %v493 = vunpack.c.l.b16 %v381
        %v494 = vunpack.c.l.b16 %v382
        %v495 = vunpack.c.l.b16 %v383
        %v496 = vunpack.c.l.b16 %v384
        %v497 = vunpack.c.l.b16 %v385
        %v498 = vunpack.c.l.b16 %v386
        %v499 = vunpack.c.l.b16 %v387
        %v500 = vunpack.c.l.b16 %v388
        %v501 = vunpack.c.l.b16 %v389
        %v502 = vpack.c.b16 %v487, %v486
        %v503 = vpack.c.b16 %v489, %v488
        %v504 = vpack.c.b16 %v491, %v490
        %v505 = vpack.c.b16 %v493, %v492
        %v506 = vpack.c.b16 %v495, %v494
        %v507 = vpack.c.b16 %v497, %v496
        %v508 = vpack.c.b16 %v499, %v498
        %v509 = vpack.c.b16 %v501, %v500
        %518 = vmatpush.bf16.msra.mxu0 %v509
        %519 = vmatpush.bf16.msra.mxu0 %v508
        %520 = vmatpush.bf16.msra.mxu0 %v507
        %521 = vmatpush.bf16.msra.mxu0 %v506
        %522 = vmatpush.bf16.msra.mxu0 %v505
        %523 = vmatpush.bf16.msra.mxu0 %v504
        %524 = vmatpush.bf16.msra.mxu0 %v503
        %525 = vmatpush.bf16.msra.mxu0 %v502
        %526 = vmatmul.bf16.gmra.mxu0 %v373
        %v527 = vpop.f32.mrf.mxu0
        %v528 = vadd.f32 %v466, %v527
        %v529 = vpop.f32.mrf.mxu0
        %v530 = vadd.f32 %v468, %v529
        %531 = vdwg.mxu0
        %v532 = vrot.slane %v349, 1
        %v533 = vrot.slane %v350, 1
        %vm534 = vcmp.lt.s32.totalorder %v354, 7
        %v535 = vsel %vm534, %v532, %v533
        %v536 = vsel %vm534, %v533, %v532
        %v537 = vadd.s32 %v354, 1
        %v538 = vadd.s32 %v358, 1
        %vm539 = vcmp.ge.s32.totalorder %v537, 0
        %vm540 = vcmp.ge.s32.totalorder %v538, 0
        %vm541 = vcmp.lt.s32.totalorder %v537, 16
        %vm542 = vcmp.lt.s32.totalorder %v538, 16
        %vm543 = vmand %vm539, %vm541
        %vm544 = vmand %vm540, %vm542
        %v545 = vsel %vm543, 1, 0
        %v546 = vsel %vm544, 1, 0
        %v547 = vcvt.s32.f32 %v545
        %v548 = vcvt.s32.f32 %v546
        %v549 = vmul.f32 %v535, %v547
        %v550 = vmul.f32 %v536, %v548
        %v551 = vpack.c.bf16 %v550, %v549
        %s552 = scalar_lea.vmem [#allocation5], 128
        %v553 = vld [vmem:[%s552] sm:$0xf]
        %v554 = vld [vmem:[%s552 + $0x4] sm:$0xf]
        %v555 = vld [vmem:[%s552 + $0x8] sm:$0xf]
        %v556 = vld [vmem:[%s552 + $0xc] sm:$0xf]
        %v557 = vld [vmem:[%s552 + $0x10] sm:$0xf]
        %v558 = vld [vmem:[%s552 + $0x14] sm:$0xf]
        %v559 = vld [vmem:[%s552 + $0x18] sm:$0xf]
        %v560 = vld [vmem:[%s552 + $0x1c] sm:$0xf]
        %v561 = vld [vmem:[%s552 + $0x20] sm:$0xf]
        %v562 = vld [vmem:[%s552 + $0x24] sm:$0xf]
        %v563 = vld [vmem:[%s552 + $0x28] sm:$0xf]
        %v564 = vld [vmem:[%s552 + $0x2c] sm:$0xf]
        %v565 = vld [vmem:[%s552 + $0x30] sm:$0xf]
        %v566 = vld [vmem:[%s552 + $0x34] sm:$0xf]
        %v567 = vld [vmem:[%s552 + $0x38] sm:$0xf]
        %v568 = vld [vmem:[%s552 + $0x3c] sm:$0xf]
        %v585 = vunpack.c.l.b16 %v553
        %v586 = vunpack.c.l.b16 %v554
        %v587 = vunpack.c.l.b16 %v555
        %v588 = vunpack.c.l.b16 %v556
        %v589 = vunpack.c.l.b16 %v557
        %v590 = vunpack.c.l.b16 %v558
        %v591 = vunpack.c.l.b16 %v559
        %v592 = vunpack.c.l.b16 %v560
        %v593 = vunpack.c.l.b16 %v561
        %v594 = vunpack.c.l.b16 %v562
        %v595 = vunpack.c.l.b16 %v563
        %v596 = vunpack.c.l.b16 %v564
        %v597 = vunpack.c.l.b16 %v565
        %v598 = vunpack.c.l.b16 %v566
        %v599 = vunpack.c.l.b16 %v567
        %v600 = vunpack.c.l.b16 %v568
        %v601 = vpack.c.b16 %v586, %v585
        %v602 = vpack.c.b16 %v588, %v587
        %v603 = vpack.c.b16 %v590, %v589
        %v604 = vpack.c.b16 %v592, %v591
        %v605 = vpack.c.b16 %v594, %v593
        %v606 = vpack.c.b16 %v596, %v595
        %v607 = vpack.c.b16 %v598, %v597
        %v608 = vpack.c.b16 %v600, %v599
        %617 = vmatpush.bf16.msra.mxu0 %v608
        %618 = vmatpush.bf16.msra.mxu0 %v607
        %619 = vmatpush.bf16.msra.mxu0 %v606
        %620 = vmatpush.bf16.msra.mxu0 %v605
        %621 = vmatpush.bf16.msra.mxu0 %v604
        %622 = vmatpush.bf16.msra.mxu0 %v603
        %623 = vmatpush.bf16.msra.mxu0 %v602
        %624 = vmatpush.bf16.msra.mxu0 %v601
        %625 = vmatmul.bf16.gmra.mxu0 %v551
        %v626 = vpop.f32.mrf.mxu0
        %v627 = vadd.f32 0.0, %v626
        %v628 = vpop.f32.mrf.mxu0
        %v629 = vadd.f32 0.0, %v628
        %630 = vdwg.mxu0
        %v631 = vadd.f32 %v528, %v627
        %v632 = vadd.f32 %v530, %v629
        %v633 = vld [vmem:[%s2] sm:$0x1]
        %v635 = vperm.slane %v633, 0
        %v637 = vadd.f32 %v631, %v635
        %v638 = vadd.f32 %v632, %v635
        %v639 = vmax.f32 %v637, 0.0
        %v640 = vmax.f32 %v638, 0.0
        %v641 = vmin.f32 %v639, 6.0
        %v642 = vmin.f32 %v640, 6.0
        %v643 = vpack.c.bf16 %v642, %v641
        %v644 = vld [vmem:[#allocation7] sm:$0xf]
        %v645 = vld [vmem:[#allocation7 + $0x4] sm:$0xf]
        %v646 = vld [vmem:[#allocation7 + $0x8] sm:$0xf]
        %v647 = vld [vmem:[#allocation7 + $0xc] sm:$0xf]
        %v648 = vld [vmem:[#allocation7 + $0x10] sm:$0xf]
        %v649 = vld [vmem:[#allocation7 + $0x14] sm:$0xf]
        %v650 = vld [vmem:[#allocation7 + $0x18] sm:$0xf]
        %v651 = vld [vmem:[#allocation7 + $0x1c] sm:$0xf]
        %v652 = vld [vmem:[#allocation7 + $0x20] sm:$0xf]
        %v653 = vld [vmem:[#allocation7 + $0x24] sm:$0xf]
        %v654 = vld [vmem:[#allocation7 + $0x28] sm:$0xf]
        %v655 = vld [vmem:[#allocation7 + $0x2c] sm:$0xf]
        %v656 = vld [vmem:[#allocation7 + $0x30] sm:$0xf]
        %v657 = vld [vmem:[#allocation7 + $0x34] sm:$0xf]
        %v658 = vld [vmem:[#allocation7 + $0x38] sm:$0xf]
        %v659 = vld [vmem:[#allocation7 + $0x3c] sm:$0xf]
        %v660 = vld [vmem:[%s4] sm:$0x1]
        %v662 = vperm.slane %v660, 0
        %v680 = vunpack.c.l.b16 %v644
        %v681 = vunpack.c.l.b16 %v645
        %v682 = vunpack.c.l.b16 %v646
        %v683 = vunpack.c.l.b16 %v647
        %v684 = vunpack.c.l.b16 %v648
        %v685 = vunpack.c.l.b16 %v649
        %v686 = vunpack.c.l.b16 %v650
        %v687 = vunpack.c.l.b16 %v651
        %v688 = vunpack.c.l.b16 %v652
        %v689 = vunpack.c.l.b16 %v653
        %v690 = vunpack.c.l.b16 %v654
        %v691 = vunpack.c.l.b16 %v655
        %v692 = vunpack.c.l.b16 %v656
        %v693 = vunpack.c.l.b16 %v657
        %v694 = vunpack.c.l.b16 %v658
        %v695 = vunpack.c.l.b16 %v659
        %v696 = vpack.c.b16 %v681, %v680
        %v697 = vpack.c.b16 %v683, %v682
        %v698 = vpack.c.b16 %v685, %v684
        %v699 = vpack.c.b16 %v687, %v686
        %v700 = vpack.c.b16 %v689, %v688
        %v701 = vpack.c.b16 %v691, %v690
        %v702 = vpack.c.b16 %v693, %v692
        %v703 = vpack.c.b16 %v695, %v694
        %712 = vmatpush.bf16.msra.mxu0 %v703
        %713 = vmatpush.bf16.msra.mxu0 %v702
        %714 = vmatpush.bf16.msra.mxu0 %v701
        %715 = vmatpush.bf16.msra.mxu0 %v700
        %716 = vmatpush.bf16.msra.mxu0 %v699
        %717 = vmatpush.bf16.msra.mxu0 %v698
        %718 = vmatpush.bf16.msra.mxu0 %v697
        %719 = vmatpush.bf16.msra.mxu0 %v696
        %720 = vmatmul.bf16.gmra.mxu0 %v643
        %v721 = vpop.f32.mrf.mxu0
        %v722 = vadd.f32 %v662, %v721
        %v723 = vpop.f32.mrf.mxu0
        %v724 = vadd.f32 %v662, %v723
        %725 = vdwg.mxu0
        %v726 = vmax.f32 %v722, 0.0
        %v727 = vmax.f32 %v724, 0.0
        %v728 = vmin.f32 %v726, 6.0
        %v729 = vmin.f32 %v727, 6.0
        %v730 = vrot.slane %v728, 7
        %v731 = vrot.slane %v729, 7
        %v732 = vsel %vm355, %v730, %v731
        %v733 = vsel %vm355, %v731, %v730
        %v734 = vmul.f32 %v733, %v369
        %v735 = vmul.f32 %v732, %v370
        %v736 = vpack.c.bf16 %v735, %v734
        %v737 = vld [vmem:[#allocation8] sm:$0xf]
        %v738 = vld [vmem:[#allocation8 + $0x4] sm:$0xf]
        %v739 = vld [vmem:[#allocation8 + $0x8] sm:$0xf]
        %v740 = vld [vmem:[#allocation8 + $0xc] sm:$0xf]
        %v741 = vld [vmem:[#allocation8 + $0x10] sm:$0xf]
        %v742 = vld [vmem:[#allocation8 + $0x14] sm:$0xf]
        %v743 = vld [vmem:[#allocation8 + $0x18] sm:$0xf]
        %v744 = vld [vmem:[#allocation8 + $0x1c] sm:$0xf]
        %v745 = vld [vmem:[#allocation8 + $0x20] sm:$0xf]
        %v746 = vld [vmem:[#allocation8 + $0x24] sm:$0xf]
        %v747 = vld [vmem:[#allocation8 + $0x28] sm:$0xf]
        %v748 = vld [vmem:[#allocation8 + $0x2c] sm:$0xf]
        %v749 = vld [vmem:[#allocation8 + $0x30] sm:$0xf]
        %v750 = vld [vmem:[#allocation8 + $0x34] sm:$0xf]
        %v751 = vld [vmem:[#allocation8 + $0x38] sm:$0xf]
        %v752 = vld [vmem:[#allocation8 + $0x3c] sm:$0xf]
        %v753 = vpack.c.bf16 %v729, %v728
        %s754 = scalar_lea.vmem [#allocation8], 64
        %v755 = vld [vmem:[%s754] sm:$0xf]
        %v756 = vld [vmem:[%s754 + $0x4] sm:$0xf]
        %v757 = vld [vmem:[%s754 + $0x8] sm:$0xf]
        %v758 = vld [vmem:[%s754 + $0xc] sm:$0xf]
        %v759 = vld [vmem:[%s754 + $0x10] sm:$0xf]
        %v760 = vld [vmem:[%s754 + $0x14] sm:$0xf]
        %v761 = vld [vmem:[%s754 + $0x18] sm:$0xf]
        %v762 = vld [vmem:[%s754 + $0x1c] sm:$0xf]
        %v763 = vld [vmem:[%s754 + $0x20] sm:$0xf]
        %v764 = vld [vmem:[%s754 + $0x24] sm:$0xf]
        %v765 = vld [vmem:[%s754 + $0x28] sm:$0xf]
        %v766 = vld [vmem:[%s754 + $0x2c] sm:$0xf]
        %v767 = vld [vmem:[%s754 + $0x30] sm:$0xf]
        %v768 = vld [vmem:[%s754 + $0x34] sm:$0xf]
        %v769 = vld [vmem:[%s754 + $0x38] sm:$0xf]
        %v770 = vld [vmem:[%s754 + $0x3c] sm:$0xf]
        %v787 = vunpack.c.l.b16 %v755
        %v788 = vunpack.c.l.b16 %v756
        %v789 = vunpack.c.l.b16 %v757
        %v790 = vunpack.c.l.b16 %v758
        %v791 = vunpack.c.l.b16 %v759
        %v792 = vunpack.c.l.b16 %v760
        %v793 = vunpack.c.l.b16 %v761
        %v794 = vunpack.c.l.b16 %v762
        %v795 = vunpack.c.l.b16 %v763
        %v796 = vunpack.c.l.b16 %v764
        %v797 = vunpack.c.l.b16 %v765
        %v798 = vunpack.c.l.b16 %v766
        %v799 = vunpack.c.l.b16 %v767
        %v800 = vunpack.c.l.b16 %v768
        %v801 = vunpack.c.l.b16 %v769
        %v802 = vunpack.c.l.b16 %v770
        %v803 = vpack.c.b16 %v788, %v787
        %v804 = vpack.c.b16 %v790, %v789
        %v805 = vpack.c.b16 %v792, %v791
        %v806 = vpack.c.b16 %v794, %v793
        %v807 = vpack.c.b16 %v796, %v795
        %v808 = vpack.c.b16 %v798, %v797
        %v809 = vpack.c.b16 %v800, %v799
        %v810 = vpack.c.b16 %v802, %v801
        %819 = vmatpush.bf16.msra.mxu0 %v810
        %820 = vmatpush.bf16.msra.mxu0 %v809
        %821 = vmatpush.bf16.msra.mxu0 %v808
        %822 = vmatpush.bf16.msra.mxu0 %v807
        %823 = vmatpush.bf16.msra.mxu0 %v806
        %824 = vmatpush.bf16.msra.mxu0 %v805
        %825 = vmatpush.bf16.msra.mxu0 %v804
        %826 = vmatpush.bf16.msra.mxu0 %v803
        %827 = vmatmul.bf16.gmra.mxu0 %v753
        %v828 = vpop.f32.mrf.mxu0
        %v829 = vadd.f32 0.0, %v828
        %v830 = vpop.f32.mrf.mxu0
        %v831 = vadd.f32 0.0, %v830
        %832 = vdwg.mxu0
        %v849 = vunpack.c.l.b16 %v737
        %v850 = vunpack.c.l.b16 %v738
        %v851 = vunpack.c.l.b16 %v739
        %v852 = vunpack.c.l.b16 %v740
        %v853 = vunpack.c.l.b16 %v741
        %v854 = vunpack.c.l.b16 %v742
        %v855 = vunpack.c.l.b16 %v743
        %v856 = vunpack.c.l.b16 %v744
        %v857 = vunpack.c.l.b16 %v745
        %v858 = vunpack.c.l.b16 %v746
        %v859 = vunpack.c.l.b16 %v747
        %v860 = vunpack.c.l.b16 %v748
        %v861 = vunpack.c.l.b16 %v749
        %v862 = vunpack.c.l.b16 %v750
        %v863 = vunpack.c.l.b16 %v751
        %v864 = vunpack.c.l.b16 %v752
        %v865 = vpack.c.b16 %v850, %v849
        %v866 = vpack.c.b16 %v852, %v851
        %v867 = vpack.c.b16 %v854, %v853
        %v868 = vpack.c.b16 %v856, %v855
        %v869 = vpack.c.b16 %v858, %v857
        %v870 = vpack.c.b16 %v860, %v859
        %v871 = vpack.c.b16 %v862, %v861
        %v872 = vpack.c.b16 %v864, %v863
        %881 = vmatpush.bf16.msra.mxu0 %v872
        %882 = vmatpush.bf16.msra.mxu0 %v871
        %883 = vmatpush.bf16.msra.mxu0 %v870
        %884 = vmatpush.bf16.msra.mxu0 %v869
        %885 = vmatpush.bf16.msra.mxu0 %v868
        %886 = vmatpush.bf16.msra.mxu0 %v867
        %887 = vmatpush.bf16.msra.mxu0 %v866
        %888 = vmatpush.bf16.msra.mxu0 %v865
        %889 = vmatmul.bf16.gmra.mxu0 %v736
        %v890 = vpop.f32.mrf.mxu0
        %v891 = vadd.f32 %v829, %v890
        %v892 = vpop.f32.mrf.mxu0
        %v893 = vadd.f32 %v831, %v892
        %894 = vdwg.mxu0
        %v895 = vrot.slane %v728, 1
        %v896 = vrot.slane %v729, 1
        %v897 = vsel %vm534, %v895, %v896
        %v898 = vsel %vm534, %v896, %v895
        %v899 = vmul.f32 %v897, %v547
        %v900 = vmul.f32 %v898, %v548
        %v901 = vpack.c.bf16 %v900, %v899
        %s902 = scalar_lea.vmem [#allocation8], 128
        %v903 = vld [vmem:[%s902] sm:$0xf]
        %v904 = vld [vmem:[%s902 + $0x4] sm:$0xf]
        %v905 = vld [vmem:[%s902 + $0x8] sm:$0xf]
        %v906 = vld [vmem:[%s902 + $0xc] sm:$0xf]
        %v907 = vld [vmem:[%s902 + $0x10] sm:$0xf]
        %v908 = vld [vmem:[%s902 + $0x14] sm:$0xf]
        %v909 = vld [vmem:[%s902 + $0x18] sm:$0xf]
        %v910 = vld [vmem:[%s902 + $0x1c] sm:$0xf]
        %v911 = vld [vmem:[%s902 + $0x20] sm:$0xf]
        %v912 = vld [vmem:[%s902 + $0x24] sm:$0xf]
        %v913 = vld [vmem:[%s902 + $0x28] sm:$0xf]
        %v914 = vld [vmem:[%s902 + $0x2c] sm:$0xf]
        %v915 = vld [vmem:[%s902 + $0x30] sm:$0xf]
        %v916 = vld [vmem:[%s902 + $0x34] sm:$0xf]
        %v917 = vld [vmem:[%s902 + $0x38] sm:$0xf]
        %v918 = vld [vmem:[%s902 + $0x3c] sm:$0xf]
        %v935 = vunpack.c.l.b16 %v903
        %v936 = vunpack.c.l.b16 %v904
        %v937 = vunpack.c.l.b16 %v905
        %v938 = vunpack.c.l.b16 %v906
        %v939 = vunpack.c.l.b16 %v907
        %v940 = vunpack.c.l.b16 %v908
        %v941 = vunpack.c.l.b16 %v909
        %v942 = vunpack.c.l.b16 %v910
        %v943 = vunpack.c.l.b16 %v911
        %v944 = vunpack.c.l.b16 %v912
        %v945 = vunpack.c.l.b16 %v913
        %v946 = vunpack.c.l.b16 %v914
        %v947 = vunpack.c.l.b16 %v915
        %v948 = vunpack.c.l.b16 %v916
        %v949 = vunpack.c.l.b16 %v917
        %v950 = vunpack.c.l.b16 %v918
        %v951 = vpack.c.b16 %v936, %v935
        %v952 = vpack.c.b16 %v938, %v937
        %v953 = vpack.c.b16 %v940, %v939
        %v954 = vpack.c.b16 %v942, %v941
        %v955 = vpack.c.b16 %v944, %v943
        %v956 = vpack.c.b16 %v946, %v945
        %v957 = vpack.c.b16 %v948, %v947
        %v958 = vpack.c.b16 %v950, %v949
        %967 = vmatpush.bf16.msra.mxu0 %v958
        %968 = vmatpush.bf16.msra.mxu0 %v957
        %969 = vmatpush.bf16.msra.mxu0 %v956
        %970 = vmatpush.bf16.msra.mxu0 %v955
        %971 = vmatpush.bf16.msra.mxu0 %v954
        %972 = vmatpush.bf16.msra.mxu0 %v953
        %973 = vmatpush.bf16.msra.mxu0 %v952
        %974 = vmatpush.bf16.msra.mxu0 %v951
        %975 = vmatmul.bf16.gmra.mxu0 %v901
        %v976 = vpop.f32.mrf.mxu0
        %v977 = vadd.f32 0.0, %v976
        %v978 = vpop.f32.mrf.mxu0
        %v979 = vadd.f32 0.0, %v978
        %980 = vdwg.mxu0
        %v981 = vadd.f32 %v891, %v977
        %v982 = vadd.f32 %v893, %v979
        %v983 = vld [vmem:[%s6] sm:$0x1]
        %v985 = vperm.slane %v983, 0
        %v987 = vadd.f32 %v981, %v985
        %v988 = vadd.f32 %v982, %v985
        %v989 = vmax.f32 %v987, 0.0
        %v990 = vmax.f32 %v988, 0.0
        %v991 = vmin.f32 %v989, 6.0
        %v992 = vmin.f32 %v990, 6.0
        %v993 = vadd.f32 %v991, %v349
        %v994 = vadd.f32 %v992, %v350
        %995 = vst [vmem:[%s348] sm:$0xff] %v993
        %996 = vst [vmem:[%s348 + $0x8] sm:$0xff] %v994
        %s997 = sand.u32 %s186, 1
        %s998 = scalar_lea.sflag [#allocation4], %s997
        %s999 = sand.u32 %s186, 1
        %s1000 = smul.addr %s999, 16
        %s1001 = scalar_lea.vmem [#allocation10], %s1000
        // Predicated region
        $region65: #{tpu_custom_call.1} parent=47 // pred_check
          %p1002 = pneg %p196
        $region66: #{tpu_custom_call.1} parent=47 // pred_check_branch
          %1004 = sbr.rel (%p1002) target = $region68
        $region67: #{tpu_custom_call.1} parent=47 // pred_region
          %1006 = vsyncadd %s998, 0
          %s1007 = smul.addr %s26, 2
          %s1008 = smul.addr %s1007, 8
          %s1009 = scalar_lea.hbm %s7, %s1008
          %s1010 = sshll.u32 %s1001, 4
          %s1011 = int_to_ptr.vmem [resolvable:$true] %s1010
          %s1012 = sshll.u32 %s1009, 4
          %s1013 = int_to_ptr.hbm [resolvable:$true] %s1012
          %1018 = dma.vmem_to_hbm [thread:$0]  %s1011, 256, %s1013, %s998, 128, 128, 8
        $region68: #{tpu_custom_call.1} parent=47 // pred_fallthru
          _
      $region48: #{tpu_custom_call.1} parent=5 // pred_fallthru
        _
      %p1019 = scmp.le.s32.totalorder 2, %s21
      // Predicated region
      $region69: #{tpu_custom_call.1} parent=5 // pred_check
        %p1020 = pneg %p1019
      $region70: #{tpu_custom_call.1} parent=5 // pred_check_branch
        %1022 = sbr.rel (%p1020) target = $region72
      $region71: #{tpu_custom_call.1} parent=5 // pred_region
        %s1023 = ssub.s32 %s21, 2
        // Predicated region
        $region73: #{tpu_custom_call.1} parent=71 // pred_check
          %p1024 = pneg %p202
        $region74: #{tpu_custom_call.1} parent=71 // pred_check_branch
          %1026 = sbr.rel (%p1024) target = $region76
        $region75: #{tpu_custom_call.1} parent=71 // pred_region
          %s1027 = sand.u32 %s187, 1
          %s1028 = scalar_lea.sflag [#allocation4], %s1027
          %s1029 = sand.u32 %s187, 1
          %s1030 = smul.addr %s1029, 16
          %s1031 = scalar_lea.vmem [#allocation10], %s1030
          %1033 = dma.done %s1028, 256
        $region76: #{tpu_custom_call.1} parent=71 // pred_fallthru
          _
      $region72: #{tpu_custom_call.1} parent=5 // pred_fallthru
        _
    $region6: #{tpu_custom_call.1} parent=1 // loop_footer
      %s25 = sadd.s32 1, %s21
    $region7: #{tpu_custom_call.1} parent=1 // loop_footer_branch
      %20 = sbr.rel target = $region3
    $region8: #{tpu_custom_call.1} parent=1 // loop_exit
      _
    %1034 = vsyncpa [#allocation3], 1
    %s1035 = scalar_lea.sflag [#allocation3], 1
    %1036 = vsyncpa %s1035, 1
    %1037 = vsyncpa [#allocation6], 1
    %1038 = vsyncpa [#allocation9], 1
    %1039 = vsyncpa [#allocation4], 1
    %s1040 = scalar_lea.sflag [#allocation4], 1
    %1041 = vsyncpa %s1040, 1

</llo_original>
